<compile_context>
chip_gen: v6e
topology: v6e:2x2x1
jax: 0.10.0
libtpu: 0.0.40
codegen_flags: <defaults>
</compile_context>

<pallas_src>
import functools
import math

import jax
import jax.numpy as jnp
from jax import lax
from jax.experimental import pallas as pl
from jax.experimental.pallas import tpu as pltpu


def _round_up(v, m):
    return ((v + m - 1) // m) * m


def _mam_dense_kernel(x_ref, wt_ref, b_ref, o_ref, amax_ref, amin_ref,
                      *scratch, ck, k_total, row_sub, beta, nk):
    use_beta = beta >= 1e-4                    # static (python float via partial)
    vmax_s, vmin_s, amax_s, amin_s = scratch[:4]
    acc_s = scratch[4] if use_beta else None

    k_blk = pl.program_id(2)

    # Number of valid k entries in the *last* K block (static).  If K divides the
    # chunk evenly this equals ck and no masking code is emitted at all.
    tail_start = k_total - (nk - 1) * ck
    has_tail = tail_start < ck
    not_last = (k_blk < nk - 1) if has_tail else None   # scalar, computed once

    @pl.when(k_blk == 0)
    def _init():
        vmax_s[...] = jnp.full_like(vmax_s, -jnp.inf)
        vmin_s[...] = jnp.full_like(vmin_s, jnp.inf)
        amax_s[...] = jnp.zeros_like(amax_s)
        amin_s[...] = jnp.zeros_like(amin_s)
        if use_beta:
            acc_s[...] = jnp.zeros_like(acc_s)

    k_base = k_blk * ck
    bm = vmax_s.shape[0]

    # Single-pass running reduction over this K chunk.  Rows are processed in
    # sub-tiles so the four (row_sub, bn) accumulators stay vreg-resident for the
    # whole chunk; chunk-to-chunk state lives in VMEM scratch (touched once per
    # sub-tile per chunk).  The k loop is statically unrolled (ck <= 128) so the
    # LLO scheduler sees the full dependence chain; kidx and the tail predicate
    # are static per iteration.
    for r0 in range(0, bm, row_sub):
        r1 = r0 + row_sub
        x_blk = x_ref[r0:r1, :].astype(jnp.float32)          # (row_sub, ck)
        vmax = vmax_s[r0:r1, :]
        vmin = vmin_s[r0:r1, :]
        amax = amax_s[r0:r1, :]
        amin = amin_s[r0:r1, :]
        for kk in range(ck):
            xk = x_blk[:, kk:kk + 1]                          # (row_sub, 1)
            wk = wt_ref[kk:kk + 1, :].astype(jnp.float32)     # (1, bn)
            p = xk * wk                                       # (row_sub, bn)
            gt = p > vmax                                     # strict: first index wins
            lt = p < vmin
            if has_tail and kk >= tail_start:
                # Only the tail lanes of the last K block can be invalid.
                gt = jnp.logical_and(gt, not_last)
                lt = jnp.logical_and(lt, not_last)
            kidx = (k_base + kk).astype(jnp.int32)
            vmax = jnp.where(gt, p, vmax)
            amax = jnp.where(gt, kidx, amax)
            vmin = jnp.where(lt, p, vmin)
            amin = jnp.where(lt, kidx, amin)
        vmax_s[r0:r1, :] = vmax
        vmin_s[r0:r1, :] = vmin
        amax_s[r0:r1, :] = amax
        amin_s[r0:r1, :] = amin

    if use_beta:
        # MAC term on the MXU; weight arrives pre-transposed (K, M) and K-padded
        # with zeros, so this is a plain NN matmul with no in-kernel transpose.
        # Only the ragged x tail (garbage VMEM) needs zeroing before the dot.
        x_d = x_ref[...]
        if has_tail:
            col = lax.broadcasted_iota(jnp.int32, x_d.shape, 1)
            keep = jnp.logical_or(col < tail_start, not_last)
            x_d = jnp.where(keep, x_d, jnp.zeros((), x_d.dtype))
        acc_s[...] += jnp.dot(x_d, wt_ref[...],
                              preferred_element_type=jnp.float32)

    @pl.when(k_blk == nk - 1)
    def _finalize():
        c = vmax_s[...] + vmin_s[...]
        if use_beta:
            out = (1.0 - beta) * c + beta * acc_s[...]
        else:
            out = c
        out = out + b_ref[...]
        o_ref[...] = out.astype(o_ref.dtype)
        amax_ref[...] = amax_s[...]
        amin_ref[...] = amin_s[...]


def mam_dense_forward(x, weight, bias=None, beta=0.0, *,
                      block_rows=128, block_cols=128, block_k=128):
    """Pallas forward of MAMDense. Returns (out, argmax, argmin)."""
    *batch_shape, k = x.shape
    m = weight.shape[0]
    assert weight.shape == (m, k)
    assert block_cols % 128 == 0 and block_rows % 8 == 0 and block_k % 128 == 0

    beta = float(beta)
    use_beta = beta >= 1e-4

    x_flat = x.reshape(-1, k)          # no row padding (no extra HBM copy)
    n = x_flat.shape[0]

    # Lane-dense output tiles: pad out_features up to a multiple of the column
    # tile (>=128).  Weight/bias pads are tiny; activations are untouched.
    bn = min(block_cols, _round_up(m, 128))
    m_pad = _round_up(m, bn)

    # K chunk: whole K if small, else 128-wide chunks streamed over a grid axis
    # (bounds unrolled code size and the resident weight slice).
    ck = k if k <= block_k else block_k
    nk = pl.cdiv(k, ck)
    k_pad = nk * ck

    # Pre-transpose the weight to (K, M): M on the lane axis for the running
    # state, and the MXU consumes it directly.  Zero-pad K so the MAC dot never
    # touches stale VMEM on ragged K tails.  dtype preserved (no astype).
    wt = weight.T
    if m_pad > m or k_pad > k:
        wt = jnp.pad(wt, ((0, k_pad - k), (0, m_pad - m)))

    bias_arr = bias if bias is not None else jnp.zeros((m,), jnp.float32)
    bias_2d = bias_arr.reshape(1, m).astype(jnp.float32)
    if m_pad > m:
        bias_2d = jnp.pad(bias_2d, ((0, 0), (0, m_pad - m)))

    # Row tile: large enough to amortise per-step overhead and weight re-reads,
    # clamped (to a multiple of 8) for small problems.  row_sub = 32 keeps the
    # four running accumulators (~16 vregs) plus temporaries comfortably inside
    # the 64-vreg file.
    bm = min(block_rows, _round_up(n, 8))
    row_sub = min(32, bm)
    while bm % row_sub:
        row_sub -= 8

    grid = (m_pad // bn, pl.cdiv(n, bm), nk)
    kernel = functools.partial(_mam_dense_kernel, ck=ck, k_total=k,
                               row_sub=row_sub, beta=beta, nk=nk)

    scratch_shapes = [
        pltpu.VMEM((bm, bn), jnp.float32),   # running max
        pltpu.VMEM((bm, bn), jnp.float32),   # running min
        pltpu.VMEM((bm, bn), jnp.int32),     # running argmax
        pltpu.VMEM((bm, bn), jnp.int32),     # running argmin
    ]
    if use_beta:
        scratch_shapes.append(pltpu.VMEM((bm, bn), jnp.float32))  # MAC accumulator

    c, amax, amin = pl.pallas_call(
        kernel,
        out_shape=(
            jax.ShapeDtypeStruct((n, m_pad), x.dtype),
            jax.ShapeDtypeStruct((n, m_pad), jnp.int32),
            jax.ShapeDtypeStruct((n, m_pad), jnp.int32),
        ),
        grid=grid,
        in_specs=[
            pl.BlockSpec((bm, ck), lambda j, i, kb: (i, kb)),   # activation tile
            pl.BlockSpec((ck, bn), lambda j, i, kb: (kb, j)),   # weight.T tile
            pl.BlockSpec((1, bn), lambda j, i, kb: (0, j)),     # bias tile
        ],
        out_specs=(
            pl.BlockSpec((bm, bn), lambda j, i, kb: (i, j)),
            pl.BlockSpec((bm, bn), lambda j, i, kb: (i, j)),
            pl.BlockSpec((bm, bn), lambda j, i, kb: (i, j)),
        ),
        scratch_shapes=scratch_shapes,
        compiler_params=pltpu.CompilerParams(
            dimension_semantics=("parallel", "parallel", "arbitrary")),
    )(x_flat, wt, bias_2d)

    out = c[:, :m].reshape(*batch_shape, m)
    # TODO(synk): argmax/argmin could be emitted as int16 to cut HBM writeback;
    # kept int32 to match the module's integer index outputs exactly.
    amax = amax[:, :m]
    amin = amin[:, :m]
    return out, amax, amin


def _reference_forward(x, weight, bias, beta):
    """Pure-JAX reference mirroring the PyTorch module."""
    *batch_shape, k = x.shape
    m = weight.shape[0]
    xf = x.reshape(-1, k)
    prod = xf[:, None, :] * weight[None, :, :]          # (N, M, K)
    c = prod.max(-1) + prod.min(-1)
    amax = prod.argmax(-1).astype(jnp.int32)
    amin = prod.argmin(-1).astype(jnp.int32)
    if beta >= 1e-4:
        d = xf @ weight.T
        out = (1.0 - beta) * c + beta * d
    else:
        out = c
    if bias is not None:
        out = out + bias[None, :]
    return out.reshape(*batch_shape, m), amax, amin


if __name__ == "__main__":
    # Module config: in_features=32, out_features=16, bias=True, beta=False (-> beta=0.0)
    in_features, out_features = 32, 16
    batch, seq = 2, 8

    key = jax.random.PRNGKey(0)
    kx, kw, kb = jax.random.split(key, 3)

    # Deterministic init matching torch reset_parameters():
    # kaiming_uniform_(a=sqrt(5)) -> U(-1/sqrt(fan_in), 1/sqrt(fan_in)); bias same bound.
    fan_in = in_features
    bound = 1.0 / math.sqrt(fan_in)
    weight = jax.random.uniform(kw, (out_features, in_features), jnp.float32,
                                minval=-bound, maxval=bound)
    bias = jax.random.uniform(kb, (out_features,), jnp.float32,
                              minval=-bound, maxval=bound)

    x = jax.random.normal(kx, (batch, seq, in_features), jnp.float32)

    out, argmax, argmin = mam_dense_forward(x, weight, bias, beta=0.0)
    jax.block_until_ready((out, argmax, argmin))

    # Sanity check against the pure-JAX reference.
    ref_out, ref_amax, ref_amin = _reference_forward(x, weight, bias, beta=0.0)
    assert out.shape == (batch, seq, out_features)
    assert argmax.shape == (batch * seq, out_features)
    assert jnp.allclose(out, ref_out, atol=1e-5, rtol=1e-5)
    assert jnp.array_equal(argmax, ref_amax)
    assert jnp.array_equal(argmin, ref_amin)

    # Also exercise the beta (MAM + MAC blend) path once.
    out_b, _, _ = mam_dense_forward(x, weight, bias, beta=0.5)
    jax.block_until_ready(out_b)
    ref_b, _, _ = _reference_forward(x, weight, bias, beta=0.5)
    assert jnp.allclose(out_b, ref_b, atol=1e-5, rtol=1e-5)

    print("KERNEL_OK")
</pallas_src>

<mosaic_0001>
module attributes {stable_mosaic.version = 11 : i64} {
  func.func @_mam_dense_kernel(%arg0: i32, %arg1: i32, %arg2: i32, %arg3: memref<16x32xf32, #tpu.memory_space<vmem>>, %arg4: memref<32x128xf32, #tpu.memory_space<vmem>>, %arg5: memref<1x128xf32, #tpu.memory_space<vmem>>, %arg6: memref<16x128xf32, #tpu.memory_space<vmem>>, %arg7: memref<16x128xi32, #tpu.memory_space<vmem>>, %arg8: memref<16x128xi32, #tpu.memory_space<vmem>>, %arg9: memref<16x128xf32, #tpu.memory_space<vmem>>, %arg10: memref<16x128xf32, #tpu.memory_space<vmem>>, %arg11: memref<16x128xi32, #tpu.memory_space<vmem>>, %arg12: memref<16x128xi32, #tpu.memory_space<vmem>>) attributes {dimension_semantics = [#tpu.dimension_semantics<parallel>, #tpu.dimension_semantics<parallel>, #tpu.dimension_semantics<arbitrary>], iteration_bounds = array<i64: 1, 1, 1>, scalar_prefetch = 0 : i64, scratch_operands = 4 : i64, tpu.core_type = #tpu.core_type<tc>, window_params = [{transform_indices = @transform_0, window_bounds = array<i64: 16, 32>}, {transform_indices = @transform_1, window_bounds = array<i64: 32, 128>}, {transform_indices = @transform_2, window_bounds = array<i64: 1, 128>}, {transform_indices = @transform_3, window_bounds = array<i64: 16, 128>}, {transform_indices = @transform_4, window_bounds = array<i64: 16, 128>}, {transform_indices = @transform_5, window_bounds = array<i64: 16, 128>}]} {
    %c0_i32 = arith.constant 0 : i32
    %0 = arith.cmpi eq, %arg2, %c0_i32 : i32
    %1 = arith.extui %0 : i1 to i32
    %c0_i32_0 = arith.constant 0 : i32
    %2 = arith.cmpi ne, %1, %c0_i32_0 : i32
    scf.if %2 {
      %cst = arith.constant 0xFF800000 : f32
      %464 = vector.broadcast %cst : f32 to vector<16x128xf32>
      %c0_54 = arith.constant 0 : index
      %c0_55 = arith.constant 0 : index
      %465 = vector.load %arg9[%c0_54, %c0_55] : memref<16x128xf32, #tpu.memory_space<vmem>>, vector<16x128xf32>
      tpu.vector_store %arg9[%c0_54, %c0_55], %464 {strides = array<i32>} : memref<16x128xf32, #tpu.memory_space<vmem>>, vector<16x128xf32>,
      %cst_56 = arith.constant 0x7F800000 : f32
      %466 = vector.broadcast %cst_56 : f32 to vector<16x128xf32>
      %c0_57 = arith.constant 0 : index
      %c0_58 = arith.constant 0 : index
      %467 = vector.load %arg10[%c0_57, %c0_58] : memref<16x128xf32, #tpu.memory_space<vmem>>, vector<16x128xf32>
      tpu.vector_store %arg10[%c0_57, %c0_58], %466 {strides = array<i32>} : memref<16x128xf32, #tpu.memory_space<vmem>>, vector<16x128xf32>,
      %c0_i32_59 = arith.constant 0 : i32
      %468 = vector.broadcast %c0_i32_59 : i32 to vector<16x128xi32>
      %c0_60 = arith.constant 0 : index
      %c0_61 = arith.constant 0 : index
      %469 = vector.load %arg11[%c0_60, %c0_61] : memref<16x128xi32, #tpu.memory_space<vmem>>, vector<16x128xi32>
      tpu.vector_store %arg11[%c0_60, %c0_61], %468 {strides = array<i32>} : memref<16x128xi32, #tpu.memory_space<vmem>>, vector<16x128xi32>,
      %c0_i32_62 = arith.constant 0 : i32
      %470 = vector.broadcast %c0_i32_62 : i32 to vector<16x128xi32>
      %c0_63 = arith.constant 0 : index
      %c0_64 = arith.constant 0 : index
      %471 = vector.load %arg12[%c0_63, %c0_64] : memref<16x128xi32, #tpu.memory_space<vmem>>, vector<16x128xi32>
      tpu.vector_store %arg12[%c0_63, %c0_64], %470 {strides = array<i32>} : memref<16x128xi32, #tpu.memory_space<vmem>>, vector<16x128xi32>,
    } else {
    }
    %c32_i32 = arith.constant 32 : i32
    %3 = arith.muli %arg2, %c32_i32 : i32
    %c0 = arith.constant 0 : index
    %c0_1 = arith.constant 0 : index
    %4 = vector.load %arg3[%c0, %c0_1] : memref<16x32xf32, #tpu.memory_space<vmem>>, vector<16x32xf32>
    %c0_2 = arith.constant 0 : index
    %c0_3 = arith.constant 0 : index
    %5 = vector.load %arg9[%c0_2, %c0_3] : memref<16x128xf32, #tpu.memory_space<vmem>>, vector<16x128xf32>
    %c0_4 = arith.constant 0 : index
    %c0_5 = arith.constant 0 : index
    %6 = vector.load %arg10[%c0_4, %c0_5] : memref<16x128xf32, #tpu.memory_space<vmem>>, vector<16x128xf32>
    %c0_6 = arith.constant 0 : index
    %c0_7 = arith.constant 0 : index
    %7 = vector.load %arg11[%c0_6, %c0_7] : memref<16x128xi32, #tpu.memory_space<vmem>>, vector<16x128xi32>
    %c0_8 = arith.constant 0 : index
    %c0_9 = arith.constant 0 : index
    %8 = vector.load %arg12[%c0_8, %c0_9] : memref<16x128xi32, #tpu.memory_space<vmem>>, vector<16x128xi32>
    %9 = vector.extract_strided_slice %4 {offsets = [0, 0], sizes = [16, 1], strides = [1, 1]} : vector<16x32xf32> to vector<16x1xf32>
    %c0_10 = arith.constant 0 : index
    %c0_11 = arith.constant 0 : index
    %10 = vector.load %arg4[%c0_10, %c0_11] : memref<32x128xf32, #tpu.memory_space<vmem>>, vector<1x128xf32>
    %11 = vector.broadcast %9 : vector<16x1xf32> to vector<16x128xf32>
    %12 = vector.broadcast %10 : vector<1x128xf32> to vector<16x128xf32>
    %13 = arith.mulf %11, %12 : vector<16x128xf32>
    %14 = arith.cmpf ogt, %13, %5 : vector<16x128xf32>
    %15 = arith.cmpf olt, %13, %6 : vector<16x128xf32>
    %c0_i32_12 = arith.constant 0 : i32
    %16 = arith.addi %3, %c0_i32_12 : i32
    %17 = arith.select %14, %13, %5 : vector<16x128xi1>, vector<16x128xf32>
    %18 = vector.broadcast %16 : i32 to vector<16x128xi32>
    %19 = arith.select %14, %18, %7 : vector<16x128xi1>, vector<16x128xi32>
    %20 = arith.select %15, %13, %6 : vector<16x128xi1>, vector<16x128xf32>
    %21 = vector.broadcast %16 : i32 to vector<16x128xi32>
    %22 = arith.select %15, %21, %8 : vector<16x128xi1>, vector<16x128xi32>
    %23 = vector.extract_strided_slice %4 {offsets = [0, 1], sizes = [16, 1], strides = [1, 1]} : vector<16x32xf32> to vector<16x1xf32>
    %c1 = arith.constant 1 : index
    %c0_13 = arith.constant 0 : index
    %24 = vector.load %arg4[%c1, %c0_13] : memref<32x128xf32, #tpu.memory_space<vmem>>, vector<1x128xf32>
    %25 = vector.broadcast %23 : vector<16x1xf32> to vector<16x128xf32>
    %26 = vector.broadcast %24 : vector<1x128xf32> to vector<16x128xf32>
    %27 = arith.mulf %25, %26 : vector<16x128xf32>
    %28 = arith.cmpf ogt, %27, %17 : vector<16x128xf32>
    %29 = arith.cmpf olt, %27, %20 : vector<16x128xf32>
    %c1_i32 = arith.constant 1 : i32
    %30 = arith.addi %3, %c1_i32 : i32
    %31 = arith.select %28, %27, %17 : vector<16x128xi1>, vector<16x128xf32>
    %32 = vector.broadcast %30 : i32 to vector<16x128xi32>
    %33 = arith.select %28, %32, %19 : vector<16x128xi1>, vector<16x128xi32>
    %34 = arith.select %29, %27, %20 : vector<16x128xi1>, vector<16x128xf32>
    %35 = vector.broadcast %30 : i32 to vector<16x128xi32>
    %36 = arith.select %29, %35, %22 : vector<16x128xi1>, vector<16x128xi32>
    %37 = vector.extract_strided_slice %4 {offsets = [0, 2], sizes = [16, 1], strides = [1, 1]} : vector<16x32xf32> to vector<16x1xf32>
    %c2 = arith.constant 2 : index
    %c0_14 = arith.constant 0 : index
    %38 = vector.load %arg4[%c2, %c0_14] : memref<32x128xf32, #tpu.memory_space<vmem>>, vector<1x128xf32>
    %39 = vector.broadcast %37 : vector<16x1xf32> to vector<16x128xf32>
    %40 = vector.broadcast %38 : vector<1x128xf32> to vector<16x128xf32>
    %41 = arith.mulf %39, %40 : vector<16x128xf32>
    %42 = arith.cmpf ogt, %41, %31 : vector<16x128xf32>
    %43 = arith.cmpf olt, %41, %34 : vector<16x128xf32>
    %c2_i32 = arith.constant 2 : i32
    %44 = arith.addi %3, %c2_i32 : i32
    %45 = arith.select %42, %41, %31 : vector<16x128xi1>, vector<16x128xf32>
    %46 = vector.broadcast %44 : i32 to vector<16x128xi32>
    %47 = arith.select %42, %46, %33 : vector<16x128xi1>, vector<16x128xi32>
    %48 = arith.select %43, %41, %34 : vector<16x128xi1>, vector<16x128xf32>
    %49 = vector.broadcast %44 : i32 to vector<16x128xi32>
    %50 = arith.select %43, %49, %36 : vector<16x128xi1>, vector<16x128xi32>
    %51 = vector.extract_strided_slice %4 {offsets = [0, 3], sizes = [16, 1], strides = [1, 1]} : vector<16x32xf32> to vector<16x1xf32>
    %c3 = arith.constant 3 : index
    %c0_15 = arith.constant 0 : index
    %52 = vector.load %arg4[%c3, %c0_15] : memref<32x128xf32, #tpu.memory_space<vmem>>, vector<1x128xf32>
    %53 = vector.broadcast %51 : vector<16x1xf32> to vector<16x128xf32>
    %54 = vector.broadcast %52 : vector<1x128xf32> to vector<16x128xf32>
    %55 = arith.mulf %53, %54 : vector<16x128xf32>
    %56 = arith.cmpf ogt, %55, %45 : vector<16x128xf32>
    %57 = arith.cmpf olt, %55, %48 : vector<16x128xf32>
    %c3_i32 = arith.constant 3 : i32
    %58 = arith.addi %3, %c3_i32 : i32
    %59 = arith.select %56, %55, %45 : vector<16x128xi1>, vector<16x128xf32>
    %60 = vector.broadcast %58 : i32 to vector<16x128xi32>
    %61 = arith.select %56, %60, %47 : vector<16x128xi1>, vector<16x128xi32>
    %62 = arith.select %57, %55, %48 : vector<16x128xi1>, vector<16x128xf32>
    %63 = vector.broadcast %58 : i32 to vector<16x128xi32>
    %64 = arith.select %57, %63, %50 : vector<16x128xi1>, vector<16x128xi32>
    %65 = vector.extract_strided_slice %4 {offsets = [0, 4], sizes = [16, 1], strides = [1, 1]} : vector<16x32xf32> to vector<16x1xf32>
    %c4 = arith.constant 4 : index
    %c0_16 = arith.constant 0 : index
    %66 = vector.load %arg4[%c4, %c0_16] : memref<32x128xf32, #tpu.memory_space<vmem>>, vector<1x128xf32>
    %67 = vector.broadcast %65 : vector<16x1xf32> to vector<16x128xf32>
    %68 = vector.broadcast %66 : vector<1x128xf32> to vector<16x128xf32>
    %69 = arith.mulf %67, %68 : vector<16x128xf32>
    %70 = arith.cmpf ogt, %69, %59 : vector<16x128xf32>
    %71 = arith.cmpf olt, %69, %62 : vector<16x128xf32>
    %c4_i32 = arith.constant 4 : i32
    %72 = arith.addi %3, %c4_i32 : i32
    %73 = arith.select %70, %69, %59 : vector<16x128xi1>, vector<16x128xf32>
    %74 = vector.broadcast %72 : i32 to vector<16x128xi32>
    %75 = arith.select %70, %74, %61 : vector<16x128xi1>, vector<16x128xi32>
    %76 = arith.select %71, %69, %62 : vector<16x128xi1>, vector<16x128xf32>
    %77 = vector.broadcast %72 : i32 to vector<16x128xi32>
    %78 = arith.select %71, %77, %64 : vector<16x128xi1>, vector<16x128xi32>
    %79 = vector.extract_strided_slice %4 {offsets = [0, 5], sizes = [16, 1], strides = [1, 1]} : vector<16x32xf32> to vector<16x1xf32>
    %c5 = arith.constant 5 : index
    %c0_17 = arith.constant 0 : index
    %80 = vector.load %arg4[%c5, %c0_17] : memref<32x128xf32, #tpu.memory_space<vmem>>, vector<1x128xf32>
    %81 = vector.broadcast %79 : vector<16x1xf32> to vector<16x128xf32>
    %82 = vector.broadcast %80 : vector<1x128xf32> to vector<16x128xf32>
    %83 = arith.mulf %81, %82 : vector<16x128xf32>
    %84 = arith.cmpf ogt, %83, %73 : vector<16x128xf32>
    %85 = arith.cmpf olt, %83, %76 : vector<16x128xf32>
    %c5_i32 = arith.constant 5 : i32
    %86 = arith.addi %3, %c5_i32 : i32
    %87 = arith.select %84, %83, %73 : vector<16x128xi1>, vector<16x128xf32>
    %88 = vector.broadcast %86 : i32 to vector<16x128xi32>
    %89 = arith.select %84, %88, %75 : vector<16x128xi1>, vector<16x128xi32>
    %90 = arith.select %85, %83, %76 : vector<16x128xi1>, vector<16x128xf32>
    %91 = vector.broadcast %86 : i32 to vector<16x128xi32>
    %92 = arith.select %85, %91, %78 : vector<16x128xi1>, vector<16x128xi32>
    %93 = vector.extract_strided_slice %4 {offsets = [0, 6], sizes = [16, 1], strides = [1, 1]} : vector<16x32xf32> to vector<16x1xf32>
    %c6 = arith.constant 6 : index
    %c0_18 = arith.constant 0 : index
    %94 = vector.load %arg4[%c6, %c0_18] : memref<32x128xf32, #tpu.memory_space<vmem>>, vector<1x128xf32>
    %95 = vector.broadcast %93 : vector<16x1xf32> to vector<16x128xf32>
    %96 = vector.broadcast %94 : vector<1x128xf32> to vector<16x128xf32>
    %97 = arith.mulf %95, %96 : vector<16x128xf32>
    %98 = arith.cmpf ogt, %97, %87 : vector<16x128xf32>
    %99 = arith.cmpf olt, %97, %90 : vector<16x128xf32>
    %c6_i32 = arith.constant 6 : i32
    %100 = arith.addi %3, %c6_i32 : i32
    %101 = arith.select %98, %97, %87 : vector<16x128xi1>, vector<16x128xf32>
    %102 = vector.broadcast %100 : i32 to vector<16x128xi32>
    %103 = arith.select %98, %102, %89 : vector<16x128xi1>, vector<16x128xi32>
    %104 = arith.select %99, %97, %90 : vector<16x128xi1>, vector<16x128xf32>
    %105 = vector.broadcast %100 : i32 to vector<16x128xi32>
    %106 = arith.select %99, %105, %92 : vector<16x128xi1>, vector<16x128xi32>
    %107 = vector.extract_strided_slice %4 {offsets = [0, 7], sizes = [16, 1], strides = [1, 1]} : vector<16x32xf32> to vector<16x1xf32>
    %c7 = arith.constant 7 : index
    %c0_19 = arith.constant 0 : index
    %108 = vector.load %arg4[%c7, %c0_19] : memref<32x128xf32, #tpu.memory_space<vmem>>, vector<1x128xf32>
    %109 = vector.broadcast %107 : vector<16x1xf32> to vector<16x128xf32>
    %110 = vector.broadcast %108 : vector<1x128xf32> to vector<16x128xf32>
    %111 = arith.mulf %109, %110 : vector<16x128xf32>
    %112 = arith.cmpf ogt, %111, %101 : vector<16x128xf32>
    %113 = arith.cmpf olt, %111, %104 : vector<16x128xf32>
    %c7_i32 = arith.constant 7 : i32
    %114 = arith.addi %3, %c7_i32 : i32
    %115 = arith.select %112, %111, %101 : vector<16x128xi1>, vector<16x128xf32>
    %116 = vector.broadcast %114 : i32 to vector<16x128xi32>
    %117 = arith.select %112, %116, %103 : vector<16x128xi1>, vector<16x128xi32>
    %118 = arith.select %113, %111, %104 : vector<16x128xi1>, vector<16x128xf32>
    %119 = vector.broadcast %114 : i32 to vector<16x128xi32>
    %120 = arith.select %113, %119, %106 : vector<16x128xi1>, vector<16x128xi32>
    %121 = vector.extract_strided_slice %4 {offsets = [0, 8], sizes = [16, 1], strides = [1, 1]} : vector<16x32xf32> to vector<16x1xf32>
    %c8 = arith.constant 8 : index
    %c0_20 = arith.constant 0 : index
    %122 = vector.load %arg4[%c8, %c0_20] : memref<32x128xf32, #tpu.memory_space<vmem>>, vector<1x128xf32>
    %123 = vector.broadcast %121 : vector<16x1xf32> to vector<16x128xf32>
    %124 = vector.broadcast %122 : vector<1x128xf32> to vector<16x128xf32>
    %125 = arith.mulf %123, %124 : vector<16x128xf32>
    %126 = arith.cmpf ogt, %125, %115 : vector<16x128xf32>
    %127 = arith.cmpf olt, %125, %118 : vector<16x128xf32>
    %c8_i32 = arith.constant 8 : i32
    %128 = arith.addi %3, %c8_i32 : i32
    %129 = arith.select %126, %125, %115 : vector<16x128xi1>, vector<16x128xf32>
    %130 = vector.broadcast %128 : i32 to vector<16x128xi32>
    %131 = arith.select %126, %130, %117 : vector<16x128xi1>, vector<16x128xi32>
    %132 = arith.select %127, %125, %118 : vector<16x128xi1>, vector<16x128xf32>
    %133 = vector.broadcast %128 : i32 to vector<16x128xi32>
    %134 = arith.select %127, %133, %120 : vector<16x128xi1>, vector<16x128xi32>
    %135 = vector.extract_strided_slice %4 {offsets = [0, 9], sizes = [16, 1], strides = [1, 1]} : vector<16x32xf32> to vector<16x1xf32>
    %c9 = arith.constant 9 : index
    %c0_21 = arith.constant 0 : index
    %136 = vector.load %arg4[%c9, %c0_21] : memref<32x128xf32, #tpu.memory_space<vmem>>, vector<1x128xf32>
    %137 = vector.broadcast %135 : vector<16x1xf32> to vector<16x128xf32>
    %138 = vector.broadcast %136 : vector<1x128xf32> to vector<16x128xf32>
    %139 = arith.mulf %137, %138 : vector<16x128xf32>
    %140 = arith.cmpf ogt, %139, %129 : vector<16x128xf32>
    %141 = arith.cmpf olt, %139, %132 : vector<16x128xf32>
    %c9_i32 = arith.constant 9 : i32
    %142 = arith.addi %3, %c9_i32 : i32
    %143 = arith.select %140, %139, %129 : vector<16x128xi1>, vector<16x128xf32>
    %144 = vector.broadcast %142 : i32 to vector<16x128xi32>
    %145 = arith.select %140, %144, %131 : vector<16x128xi1>, vector<16x128xi32>
    %146 = arith.select %141, %139, %132 : vector<16x128xi1>, vector<16x128xf32>
    %147 = vector.broadcast %142 : i32 to vector<16x128xi32>
    %148 = arith.select %141, %147, %134 : vector<16x128xi1>, vector<16x128xi32>
    %149 = vector.extract_strided_slice %4 {offsets = [0, 10], sizes = [16, 1], strides = [1, 1]} : vector<16x32xf32> to vector<16x1xf32>
    %c10 = arith.constant 10 : index
    %c0_22 = arith.constant 0 : index
    %150 = vector.load %arg4[%c10, %c0_22] : memref<32x128xf32, #tpu.memory_space<vmem>>, vector<1x128xf32>
    %151 = vector.broadcast %149 : vector<16x1xf32> to vector<16x128xf32>
    %152 = vector.broadcast %150 : vector<1x128xf32> to vector<16x128xf32>
    %153 = arith.mulf %151, %152 : vector<16x128xf32>
    %154 = arith.cmpf ogt, %153, %143 : vector<16x128xf32>
    %155 = arith.cmpf olt, %153, %146 : vector<16x128xf32>
    %c10_i32 = arith.constant 10 : i32
    %156 = arith.addi %3, %c10_i32 : i32
    %157 = arith.select %154, %153, %143 : vector<16x128xi1>, vector<16x128xf32>
    %158 = vector.broadcast %156 : i32 to vector<16x128xi32>
    %159 = arith.select %154, %158, %145 : vector<16x128xi1>, vector<16x128xi32>
    %160 = arith.select %155, %153, %146 : vector<16x128xi1>, vector<16x128xf32>
    %161 = vector.broadcast %156 : i32 to vector<16x128xi32>
    %162 = arith.select %155, %161, %148 : vector<16x128xi1>, vector<16x128xi32>
    %163 = vector.extract_strided_slice %4 {offsets = [0, 11], sizes = [16, 1], strides = [1, 1]} : vector<16x32xf32> to vector<16x1xf32>
    %c11 = arith.constant 11 : index
    %c0_23 = arith.constant 0 : index
    %164 = vector.load %arg4[%c11, %c0_23] : memref<32x128xf32, #tpu.memory_space<vmem>>, vector<1x128xf32>
    %165 = vector.broadcast %163 : vector<16x1xf32> to vector<16x128xf32>
    %166 = vector.broadcast %164 : vector<1x128xf32> to vector<16x128xf32>
    %167 = arith.mulf %165, %166 : vector<16x128xf32>
    %168 = arith.cmpf ogt, %167, %157 : vector<16x128xf32>
    %169 = arith.cmpf olt, %167, %160 : vector<16x128xf32>
    %c11_i32 = arith.constant 11 : i32
    %170 = arith.addi %3, %c11_i32 : i32
    %171 = arith.select %168, %167, %157 : vector<16x128xi1>, vector<16x128xf32>
    %172 = vector.broadcast %170 : i32 to vector<16x128xi32>
    %173 = arith.select %168, %172, %159 : vector<16x128xi1>, vector<16x128xi32>
    %174 = arith.select %169, %167, %160 : vector<16x128xi1>, vector<16x128xf32>
    %175 = vector.broadcast %170 : i32 to vector<16x128xi32>
    %176 = arith.select %169, %175, %162 : vector<16x128xi1>, vector<16x128xi32>
    %177 = vector.extract_strided_slice %4 {offsets = [0, 12], sizes = [16, 1], strides = [1, 1]} : vector<16x32xf32> to vector<16x1xf32>
    %c12 = arith.constant 12 : index
    %c0_24 = arith.constant 0 : index
    %178 = vector.load %arg4[%c12, %c0_24] : memref<32x128xf32, #tpu.memory_space<vmem>>, vector<1x128xf32>
    %179 = vector.broadcast %177 : vector<16x1xf32> to vector<16x128xf32>
    %180 = vector.broadcast %178 : vector<1x128xf32> to vector<16x128xf32>
    %181 = arith.mulf %179, %180 : vector<16x128xf32>
    %182 = arith.cmpf ogt, %181, %171 : vector<16x128xf32>
    %183 = arith.cmpf olt, %181, %174 : vector<16x128xf32>
    %c12_i32 = arith.constant 12 : i32
    %184 = arith.addi %3, %c12_i32 : i32
    %185 = arith.select %182, %181, %171 : vector<16x128xi1>, vector<16x128xf32>
    %186 = vector.broadcast %184 : i32 to vector<16x128xi32>
    %187 = arith.select %182, %186, %173 : vector<16x128xi1>, vector<16x128xi32>
    %188 = arith.select %183, %181, %174 : vector<16x128xi1>, vector<16x128xf32>
    %189 = vector.broadcast %184 : i32 to vector<16x128xi32>
    %190 = arith.select %183, %189, %176 : vector<16x128xi1>, vector<16x128xi32>
    %191 = vector.extract_strided_slice %4 {offsets = [0, 13], sizes = [16, 1], strides = [1, 1]} : vector<16x32xf32> to vector<16x1xf32>
    %c13 = arith.constant 13 : index
    %c0_25 = arith.constant 0 : index
    %192 = vector.load %arg4[%c13, %c0_25] : memref<32x128xf32, #tpu.memory_space<vmem>>, vector<1x128xf32>
    %193 = vector.broadcast %191 : vector<16x1xf32> to vector<16x128xf32>
    %194 = vector.broadcast %192 : vector<1x128xf32> to vector<16x128xf32>
    %195 = arith.mulf %193, %194 : vector<16x128xf32>
    %196 = arith.cmpf ogt, %195, %185 : vector<16x128xf32>
    %197 = arith.cmpf olt, %195, %188 : vector<16x128xf32>
    %c13_i32 = arith.constant 13 : i32
    %198 = arith.addi %3, %c13_i32 : i32
    %199 = arith.select %196, %195, %185 : vector<16x128xi1>, vector<16x128xf32>
    %200 = vector.broadcast %198 : i32 to vector<16x128xi32>
    %201 = arith.select %196, %200, %187 : vector<16x128xi1>, vector<16x128xi32>
    %202 = arith.select %197, %195, %188 : vector<16x128xi1>, vector<16x128xf32>
    %203 = vector.broadcast %198 : i32 to vector<16x128xi32>
    %204 = arith.select %197, %203, %190 : vector<16x128xi1>, vector<16x128xi32>
    %205 = vector.extract_strided_slice %4 {offsets = [0, 14], sizes = [16, 1], strides = [1, 1]} : vector<16x32xf32> to vector<16x1xf32>
    %c14 = arith.constant 14 : index
    %c0_26 = arith.constant 0 : index
    %206 = vector.load %arg4[%c14, %c0_26] : memref<32x128xf32, #tpu.memory_space<vmem>>, vector<1x128xf32>
    %207 = vector.broadcast %205 : vector<16x1xf32> to vector<16x128xf32>
    %208 = vector.broadcast %206 : vector<1x128xf32> to vector<16x128xf32>
    %209 = arith.mulf %207, %208 : vector<16x128xf32>
    %210 = arith.cmpf ogt, %209, %199 : vector<16x128xf32>
    %211 = arith.cmpf olt, %209, %202 : vector<16x128xf32>
    %c14_i32 = arith.constant 14 : i32
    %212 = arith.addi %3, %c14_i32 : i32
    %213 = arith.select %210, %209, %199 : vector<16x128xi1>, vector<16x128xf32>
    %214 = vector.broadcast %212 : i32 to vector<16x128xi32>
    %215 = arith.select %210, %214, %201 : vector<16x128xi1>, vector<16x128xi32>
    %216 = arith.select %211, %209, %202 : vector<16x128xi1>, vector<16x128xf32>
    %217 = vector.broadcast %212 : i32 to vector<16x128xi32>
    %218 = arith.select %211, %217, %204 : vector<16x128xi1>, vector<16x128xi32>
    %219 = vector.extract_strided_slice %4 {offsets = [0, 15], sizes = [16, 1], strides = [1, 1]} : vector<16x32xf32> to vector<16x1xf32>
    %c15 = arith.constant 15 : index
    %c0_27 = arith.constant 0 : index
    %220 = vector.load %arg4[%c15, %c0_27] : memref<32x128xf32, #tpu.memory_space<vmem>>, vector<1x128xf32>
    %221 = vector.broadcast %219 : vector<16x1xf32> to vector<16x128xf32>
    %222 = vector.broadcast %220 : vector<1x128xf32> to vector<16x128xf32>
    %223 = arith.mulf %221, %222 : vector<16x128xf32>
    %224 = arith.cmpf ogt, %223, %213 : vector<16x128xf32>
    %225 = arith.cmpf olt, %223, %216 : vector<16x128xf32>
    %c15_i32 = arith.constant 15 : i32
    %226 = arith.addi %3, %c15_i32 : i32
    %227 = arith.select %224, %223, %213 : vector<16x128xi1>, vector<16x128xf32>
    %228 = vector.broadcast %226 : i32 to vector<16x128xi32>
    %229 = arith.select %224, %228, %215 : vector<16x128xi1>, vector<16x128xi32>
    %230 = arith.select %225, %223, %216 : vector<16x128xi1>, vector<16x128xf32>
    %231 = vector.broadcast %226 : i32 to vector<16x128xi32>
    %232 = arith.select %225, %231, %218 : vector<16x128xi1>, vector<16x128xi32>
    %233 = vector.extract_strided_slice %4 {offsets = [0, 16], sizes = [16, 1], strides = [1, 1]} : vector<16x32xf32> to vector<16x1xf32>
    %c16 = arith.constant 16 : index
    %c0_28 = arith.constant 0 : index
    %234 = vector.load %arg4[%c16, %c0_28] : memref<32x128xf32, #tpu.memory_space<vmem>>, vector<1x128xf32>
    %235 = vector.broadcast %233 : vector<16x1xf32> to vector<16x128xf32>
    %236 = vector.broadcast %234 : vector<1x128xf32> to vector<16x128xf32>
    %237 = arith.mulf %235, %236 : vector<16x128xf32>
    %238 = arith.cmpf ogt, %237, %227 : vector<16x128xf32>
    %239 = arith.cmpf olt, %237, %230 : vector<16x128xf32>
    %c16_i32 = arith.constant 16 : i32
    %240 = arith.addi %3, %c16_i32 : i32
    %241 = arith.select %238, %237, %227 : vector<16x128xi1>, vector<16x128xf32>
    %242 = vector.broadcast %240 : i32 to vector<16x128xi32>
    %243 = arith.select %238, %242, %229 : vector<16x128xi1>, vector<16x128xi32>
    %244 = arith.select %239, %237, %230 : vector<16x128xi1>, vector<16x128xf32>
    %245 = vector.broadcast %240 : i32 to vector<16x128xi32>
    %246 = arith.select %239, %245, %232 : vector<16x128xi1>, vector<16x128xi32>
    %247 = vector.extract_strided_slice %4 {offsets = [0, 17], sizes = [16, 1], strides = [1, 1]} : vector<16x32xf32> to vector<16x1xf32>
    %c17 = arith.constant 17 : index
    %c0_29 = arith.constant 0 : index
    %248 = vector.load %arg4[%c17, %c0_29] : memref<32x128xf32, #tpu.memory_space<vmem>>, vector<1x128xf32>
    %249 = vector.broadcast %247 : vector<16x1xf32> to vector<16x128xf32>
    %250 = vector.broadcast %248 : vector<1x128xf32> to vector<16x128xf32>
    %251 = arith.mulf %249, %250 : vector<16x128xf32>
    %252 = arith.cmpf ogt, %251, %241 : vector<16x128xf32>
    %253 = arith.cmpf olt, %251, %244 : vector<16x128xf32>
    %c17_i32 = arith.constant 17 : i32
    %254 = arith.addi %3, %c17_i32 : i32
    %255 = arith.select %252, %251, %241 : vector<16x128xi1>, vector<16x128xf32>
    %256 = vector.broadcast %254 : i32 to vector<16x128xi32>
    %257 = arith.select %252, %256, %243 : vector<16x128xi1>, vector<16x128xi32>
    %258 = arith.select %253, %251, %244 : vector<16x128xi1>, vector<16x128xf32>
    %259 = vector.broadcast %254 : i32 to vector<16x128xi32>
    %260 = arith.select %253, %259, %246 : vector<16x128xi1>, vector<16x128xi32>
    %261 = vector.extract_strided_slice %4 {offsets = [0, 18], sizes = [16, 1], strides = [1, 1]} : vector<16x32xf32> to vector<16x1xf32>
    %c18 = arith.constant 18 : index
    %c0_30 = arith.constant 0 : index
    %262 = vector.load %arg4[%c18, %c0_30] : memref<32x128xf32, #tpu.memory_space<vmem>>, vector<1x128xf32>
    %263 = vector.broadcast %261 : vector<16x1xf32> to vector<16x128xf32>
    %264 = vector.broadcast %262 : vector<1x128xf32> to vector<16x128xf32>
    %265 = arith.mulf %263, %264 : vector<16x128xf32>
    %266 = arith.cmpf ogt, %265, %255 : vector<16x128xf32>
    %267 = arith.cmpf olt, %265, %258 : vector<16x128xf32>
    %c18_i32 = arith.constant 18 : i32
    %268 = arith.addi %3, %c18_i32 : i32
    %269 = arith.select %266, %265, %255 : vector<16x128xi1>, vector<16x128xf32>
    %270 = vector.broadcast %268 : i32 to vector<16x128xi32>
    %271 = arith.select %266, %270, %257 : vector<16x128xi1>, vector<16x128xi32>
    %272 = arith.select %267, %265, %258 : vector<16x128xi1>, vector<16x128xf32>
    %273 = vector.broadcast %268 : i32 to vector<16x128xi32>
    %274 = arith.select %267, %273, %260 : vector<16x128xi1>, vector<16x128xi32>
    %275 = vector.extract_strided_slice %4 {offsets = [0, 19], sizes = [16, 1], strides = [1, 1]} : vector<16x32xf32> to vector<16x1xf32>
    %c19 = arith.constant 19 : index
    %c0_31 = arith.constant 0 : index
    %276 = vector.load %arg4[%c19, %c0_31] : memref<32x128xf32, #tpu.memory_space<vmem>>, vector<1x128xf32>
    %277 = vector.broadcast %275 : vector<16x1xf32> to vector<16x128xf32>
    %278 = vector.broadcast %276 : vector<1x128xf32> to vector<16x128xf32>
    %279 = arith.mulf %277, %278 : vector<16x128xf32>
    %280 = arith.cmpf ogt, %279, %269 : vector<16x128xf32>
    %281 = arith.cmpf olt, %279, %272 : vector<16x128xf32>
    %c19_i32 = arith.constant 19 : i32
    %282 = arith.addi %3, %c19_i32 : i32
    %283 = arith.select %280, %279, %269 : vector<16x128xi1>, vector<16x128xf32>
    %284 = vector.broadcast %282 : i32 to vector<16x128xi32>
    %285 = arith.select %280, %284, %271 : vector<16x128xi1>, vector<16x128xi32>
    %286 = arith.select %281, %279, %272 : vector<16x128xi1>, vector<16x128xf32>
    %287 = vector.broadcast %282 : i32 to vector<16x128xi32>
    %288 = arith.select %281, %287, %274 : vector<16x128xi1>, vector<16x128xi32>
    %289 = vector.extract_strided_slice %4 {offsets = [0, 20], sizes = [16, 1], strides = [1, 1]} : vector<16x32xf32> to vector<16x1xf32>
    %c20 = arith.constant 20 : index
    %c0_32 = arith.constant 0 : index
    %290 = vector.load %arg4[%c20, %c0_32] : memref<32x128xf32, #tpu.memory_space<vmem>>, vector<1x128xf32>
    %291 = vector.broadcast %289 : vector<16x1xf32> to vector<16x128xf32>
    %292 = vector.broadcast %290 : vector<1x128xf32> to vector<16x128xf32>
    %293 = arith.mulf %291, %292 : vector<16x128xf32>
    %294 = arith.cmpf ogt, %293, %283 : vector<16x128xf32>
    %295 = arith.cmpf olt, %293, %286 : vector<16x128xf32>
    %c20_i32 = arith.constant 20 : i32
    %296 = arith.addi %3, %c20_i32 : i32
    %297 = arith.select %294, %293, %283 : vector<16x128xi1>, vector<16x128xf32>
    %298 = vector.broadcast %296 : i32 to vector<16x128xi32>
    %299 = arith.select %294, %298, %285 : vector<16x128xi1>, vector<16x128xi32>
    %300 = arith.select %295, %293, %286 : vector<16x128xi1>, vector<16x128xf32>
    %301 = vector.broadcast %296 : i32 to vector<16x128xi32>
    %302 = arith.select %295, %301, %288 : vector<16x128xi1>, vector<16x128xi32>
    %303 = vector.extract_strided_slice %4 {offsets = [0, 21], sizes = [16, 1], strides = [1, 1]} : vector<16x32xf32> to vector<16x1xf32>
    %c21 = arith.constant 21 : index
    %c0_33 = arith.constant 0 : index
    %304 = vector.load %arg4[%c21, %c0_33] : memref<32x128xf32, #tpu.memory_space<vmem>>, vector<1x128xf32>
    %305 = vector.broadcast %303 : vector<16x1xf32> to vector<16x128xf32>
    %306 = vector.broadcast %304 : vector<1x128xf32> to vector<16x128xf32>
    %307 = arith.mulf %305, %306 : vector<16x128xf32>
    %308 = arith.cmpf ogt, %307, %297 : vector<16x128xf32>
    %309 = arith.cmpf olt, %307, %300 : vector<16x128xf32>
    %c21_i32 = arith.constant 21 : i32
    %310 = arith.addi %3, %c21_i32 : i32
    %311 = arith.select %308, %307, %297 : vector<16x128xi1>, vector<16x128xf32>
    %312 = vector.broadcast %310 : i32 to vector<16x128xi32>
    %313 = arith.select %308, %312, %299 : vector<16x128xi1>, vector<16x128xi32>
    %314 = arith.select %309, %307, %300 : vector<16x128xi1>, vector<16x128xf32>
    %315 = vector.broadcast %310 : i32 to vector<16x128xi32>
    %316 = arith.select %309, %315, %302 : vector<16x128xi1>, vector<16x128xi32>
    %317 = vector.extract_strided_slice %4 {offsets = [0, 22], sizes = [16, 1], strides = [1, 1]} : vector<16x32xf32> to vector<16x1xf32>
    %c22 = arith.constant 22 : index
    %c0_34 = arith.constant 0 : index
    %318 = vector.load %arg4[%c22, %c0_34] : memref<32x128xf32, #tpu.memory_space<vmem>>, vector<1x128xf32>
    %319 = vector.broadcast %317 : vector<16x1xf32> to vector<16x128xf32>
    %320 = vector.broadcast %318 : vector<1x128xf32> to vector<16x128xf32>
    %321 = arith.mulf %319, %320 : vector<16x128xf32>
    %322 = arith.cmpf ogt, %321, %311 : vector<16x128xf32>
    %323 = arith.cmpf olt, %321, %314 : vector<16x128xf32>
    %c22_i32 = arith.constant 22 : i32
    %324 = arith.addi %3, %c22_i32 : i32
    %325 = arith.select %322, %321, %311 : vector<16x128xi1>, vector<16x128xf32>
    %326 = vector.broadcast %324 : i32 to vector<16x128xi32>
    %327 = arith.select %322, %326, %313 : vector<16x128xi1>, vector<16x128xi32>
    %328 = arith.select %323, %321, %314 : vector<16x128xi1>, vector<16x128xf32>
    %329 = vector.broadcast %324 : i32 to vector<16x128xi32>
    %330 = arith.select %323, %329, %316 : vector<16x128xi1>, vector<16x128xi32>
    %331 = vector.extract_strided_slice %4 {offsets = [0, 23], sizes = [16, 1], strides = [1, 1]} : vector<16x32xf32> to vector<16x1xf32>
    %c23 = arith.constant 23 : index
    %c0_35 = arith.constant 0 : index
    %332 = vector.load %arg4[%c23, %c0_35] : memref<32x128xf32, #tpu.memory_space<vmem>>, vector<1x128xf32>
    %333 = vector.broadcast %331 : vector<16x1xf32> to vector<16x128xf32>
    %334 = vector.broadcast %332 : vector<1x128xf32> to vector<16x128xf32>
    %335 = arith.mulf %333, %334 : vector<16x128xf32>
    %336 = arith.cmpf ogt, %335, %325 : vector<16x128xf32>
    %337 = arith.cmpf olt, %335, %328 : vector<16x128xf32>
    %c23_i32 = arith.constant 23 : i32
    %338 = arith.addi %3, %c23_i32 : i32
    %339 = arith.select %336, %335, %325 : vector<16x128xi1>, vector<16x128xf32>
    %340 = vector.broadcast %338 : i32 to vector<16x128xi32>
    %341 = arith.select %336, %340, %327 : vector<16x128xi1>, vector<16x128xi32>
    %342 = arith.select %337, %335, %328 : vector<16x128xi1>, vector<16x128xf32>
    %343 = vector.broadcast %338 : i32 to vector<16x128xi32>
    %344 = arith.select %337, %343, %330 : vector<16x128xi1>, vector<16x128xi32>
    %345 = vector.extract_strided_slice %4 {offsets = [0, 24], sizes = [16, 1], strides = [1, 1]} : vector<16x32xf32> to vector<16x1xf32>
    %c24 = arith.constant 24 : index
    %c0_36 = arith.constant 0 : index
    %346 = vector.load %arg4[%c24, %c0_36] : memref<32x128xf32, #tpu.memory_space<vmem>>, vector<1x128xf32>
    %347 = vector.broadcast %345 : vector<16x1xf32> to vector<16x128xf32>
    %348 = vector.broadcast %346 : vector<1x128xf32> to vector<16x128xf32>
    %349 = arith.mulf %347, %348 : vector<16x128xf32>
    %350 = arith.cmpf ogt, %349, %339 : vector<16x128xf32>
    %351 = arith.cmpf olt, %349, %342 : vector<16x128xf32>
    %c24_i32 = arith.constant 24 : i32
    %352 = arith.addi %3, %c24_i32 : i32
    %353 = arith.select %350, %349, %339 : vector<16x128xi1>, vector<16x128xf32>
    %354 = vector.broadcast %352 : i32 to vector<16x128xi32>
    %355 = arith.select %350, %354, %341 : vector<16x128xi1>, vector<16x128xi32>
    %356 = arith.select %351, %349, %342 : vector<16x128xi1>, vector<16x128xf32>
    %357 = vector.broadcast %352 : i32 to vector<16x128xi32>
    %358 = arith.select %351, %357, %344 : vector<16x128xi1>, vector<16x128xi32>
    %359 = vector.extract_strided_slice %4 {offsets = [0, 25], sizes = [16, 1], strides = [1, 1]} : vector<16x32xf32> to vector<16x1xf32>
    %c25 = arith.constant 25 : index
    %c0_37 = arith.constant 0 : index
    %360 = vector.load %arg4[%c25, %c0_37] : memref<32x128xf32, #tpu.memory_space<vmem>>, vector<1x128xf32>
    %361 = vector.broadcast %359 : vector<16x1xf32> to vector<16x128xf32>
    %362 = vector.broadcast %360 : vector<1x128xf32> to vector<16x128xf32>
    %363 = arith.mulf %361, %362 : vector<16x128xf32>
    %364 = arith.cmpf ogt, %363, %353 : vector<16x128xf32>
    %365 = arith.cmpf olt, %363, %356 : vector<16x128xf32>
    %c25_i32 = arith.constant 25 : i32
    %366 = arith.addi %3, %c25_i32 : i32
    %367 = arith.select %364, %363, %353 : vector<16x128xi1>, vector<16x128xf32>
    %368 = vector.broadcast %366 : i32 to vector<16x128xi32>
    %369 = arith.select %364, %368, %355 : vector<16x128xi1>, vector<16x128xi32>
    %370 = arith.select %365, %363, %356 : vector<16x128xi1>, vector<16x128xf32>
    %371 = vector.broadcast %366 : i32 to vector<16x128xi32>
    %372 = arith.select %365, %371, %358 : vector<16x128xi1>, vector<16x128xi32>
    %373 = vector.extract_strided_slice %4 {offsets = [0, 26], sizes = [16, 1], strides = [1, 1]} : vector<16x32xf32> to vector<16x1xf32>
    %c26 = arith.constant 26 : index
    %c0_38 = arith.constant 0 : index
    %374 = vector.load %arg4[%c26, %c0_38] : memref<32x128xf32, #tpu.memory_space<vmem>>, vector<1x128xf32>
    %375 = vector.broadcast %373 : vector<16x1xf32> to vector<16x128xf32>
    %376 = vector.broadcast %374 : vector<1x128xf32> to vector<16x128xf32>
    %377 = arith.mulf %375, %376 : vector<16x128xf32>
    %378 = arith.cmpf ogt, %377, %367 : vector<16x128xf32>
    %379 = arith.cmpf olt, %377, %370 : vector<16x128xf32>
    %c26_i32 = arith.constant 26 : i32
    %380 = arith.addi %3, %c26_i32 : i32
    %381 = arith.select %378, %377, %367 : vector<16x128xi1>, vector<16x128xf32>
    %382 = vector.broadcast %380 : i32 to vector<16x128xi32>
    %383 = arith.select %378, %382, %369 : vector<16x128xi1>, vector<16x128xi32>
    %384 = arith.select %379, %377, %370 : vector<16x128xi1>, vector<16x128xf32>
    %385 = vector.broadcast %380 : i32 to vector<16x128xi32>
    %386 = arith.select %379, %385, %372 : vector<16x128xi1>, vector<16x128xi32>
    %387 = vector.extract_strided_slice %4 {offsets = [0, 27], sizes = [16, 1], strides = [1, 1]} : vector<16x32xf32> to vector<16x1xf32>
    %c27 = arith.constant 27 : index
    %c0_39 = arith.constant 0 : index
    %388 = vector.load %arg4[%c27, %c0_39] : memref<32x128xf32, #tpu.memory_space<vmem>>, vector<1x128xf32>
    %389 = vector.broadcast %387 : vector<16x1xf32> to vector<16x128xf32>
    %390 = vector.broadcast %388 : vector<1x128xf32> to vector<16x128xf32>
    %391 = arith.mulf %389, %390 : vector<16x128xf32>
    %392 = arith.cmpf ogt, %391, %381 : vector<16x128xf32>
    %393 = arith.cmpf olt, %391, %384 : vector<16x128xf32>
    %c27_i32 = arith.constant 27 : i32
    %394 = arith.addi %3, %c27_i32 : i32
    %395 = arith.select %392, %391, %381 : vector<16x128xi1>, vector<16x128xf32>
    %396 = vector.broadcast %394 : i32 to vector<16x128xi32>
    %397 = arith.select %392, %396, %383 : vector<16x128xi1>, vector<16x128xi32>
    %398 = arith.select %393, %391, %384 : vector<16x128xi1>, vector<16x128xf32>
    %399 = vector.broadcast %394 : i32 to vector<16x128xi32>
    %400 = arith.select %393, %399, %386 : vector<16x128xi1>, vector<16x128xi32>
    %401 = vector.extract_strided_slice %4 {offsets = [0, 28], sizes = [16, 1], strides = [1, 1]} : vector<16x32xf32> to vector<16x1xf32>
    %c28 = arith.constant 28 : index
    %c0_40 = arith.constant 0 : index
    %402 = vector.load %arg4[%c28, %c0_40] : memref<32x128xf32, #tpu.memory_space<vmem>>, vector<1x128xf32>
    %403 = vector.broadcast %401 : vector<16x1xf32> to vector<16x128xf32>
    %404 = vector.broadcast %402 : vector<1x128xf32> to vector<16x128xf32>
    %405 = arith.mulf %403, %404 : vector<16x128xf32>
    %406 = arith.cmpf ogt, %405, %395 : vector<16x128xf32>
    %407 = arith.cmpf olt, %405, %398 : vector<16x128xf32>
    %c28_i32 = arith.constant 28 : i32
    %408 = arith.addi %3, %c28_i32 : i32
    %409 = arith.select %406, %405, %395 : vector<16x128xi1>, vector<16x128xf32>
    %410 = vector.broadcast %408 : i32 to vector<16x128xi32>
    %411 = arith.select %406, %410, %397 : vector<16x128xi1>, vector<16x128xi32>
    %412 = arith.select %407, %405, %398 : vector<16x128xi1>, vector<16x128xf32>
    %413 = vector.broadcast %408 : i32 to vector<16x128xi32>
    %414 = arith.select %407, %413, %400 : vector<16x128xi1>, vector<16x128xi32>
    %415 = vector.extract_strided_slice %4 {offsets = [0, 29], sizes = [16, 1], strides = [1, 1]} : vector<16x32xf32> to vector<16x1xf32>
    %c29 = arith.constant 29 : index
    %c0_41 = arith.constant 0 : index
    %416 = vector.load %arg4[%c29, %c0_41] : memref<32x128xf32, #tpu.memory_space<vmem>>, vector<1x128xf32>
    %417 = vector.broadcast %415 : vector<16x1xf32> to vector<16x128xf32>
    %418 = vector.broadcast %416 : vector<1x128xf32> to vector<16x128xf32>
    %419 = arith.mulf %417, %418 : vector<16x128xf32>
    %420 = arith.cmpf ogt, %419, %409 : vector<16x128xf32>
    %421 = arith.cmpf olt, %419, %412 : vector<16x128xf32>
    %c29_i32 = arith.constant 29 : i32
    %422 = arith.addi %3, %c29_i32 : i32
    %423 = arith.select %420, %419, %409 : vector<16x128xi1>, vector<16x128xf32>
    %424 = vector.broadcast %422 : i32 to vector<16x128xi32>
    %425 = arith.select %420, %424, %411 : vector<16x128xi1>, vector<16x128xi32>
    %426 = arith.select %421, %419, %412 : vector<16x128xi1>, vector<16x128xf32>
    %427 = vector.broadcast %422 : i32 to vector<16x128xi32>
    %428 = arith.select %421, %427, %414 : vector<16x128xi1>, vector<16x128xi32>
    %429 = vector.extract_strided_slice %4 {offsets = [0, 30], sizes = [16, 1], strides = [1, 1]} : vector<16x32xf32> to vector<16x1xf32>
    %c30 = arith.constant 30 : index
    %c0_42 = arith.constant 0 : index
    %430 = vector.load %arg4[%c30, %c0_42] : memref<32x128xf32, #tpu.memory_space<vmem>>, vector<1x128xf32>
    %431 = vector.broadcast %429 : vector<16x1xf32> to vector<16x128xf32>
    %432 = vector.broadcast %430 : vector<1x128xf32> to vector<16x128xf32>
    %433 = arith.mulf %431, %432 : vector<16x128xf32>
    %434 = arith.cmpf ogt, %433, %423 : vector<16x128xf32>
    %435 = arith.cmpf olt, %433, %426 : vector<16x128xf32>
    %c30_i32 = arith.constant 30 : i32
    %436 = arith.addi %3, %c30_i32 : i32
    %437 = arith.select %434, %433, %423 : vector<16x128xi1>, vector<16x128xf32>
    %438 = vector.broadcast %436 : i32 to vector<16x128xi32>
    %439 = arith.select %434, %438, %425 : vector<16x128xi1>, vector<16x128xi32>
    %440 = arith.select %435, %433, %426 : vector<16x128xi1>, vector<16x128xf32>
    %441 = vector.broadcast %436 : i32 to vector<16x128xi32>
    %442 = arith.select %435, %441, %428 : vector<16x128xi1>, vector<16x128xi32>
    %443 = vector.extract_strided_slice %4 {offsets = [0, 31], sizes = [16, 1], strides = [1, 1]} : vector<16x32xf32> to vector<16x1xf32>
    %c31 = arith.constant 31 : index
    %c0_43 = arith.constant 0 : index
    %444 = vector.load %arg4[%c31, %c0_43] : memref<32x128xf32, #tpu.memory_space<vmem>>, vector<1x128xf32>
    %445 = vector.broadcast %443 : vector<16x1xf32> to vector<16x128xf32>
    %446 = vector.broadcast %444 : vector<1x128xf32> to vector<16x128xf32>
    %447 = arith.mulf %445, %446 : vector<16x128xf32>
    %448 = arith.cmpf ogt, %447, %437 : vector<16x128xf32>
    %449 = arith.cmpf olt, %447, %440 : vector<16x128xf32>
    %c31_i32 = arith.constant 31 : i32
    %450 = arith.addi %3, %c31_i32 : i32
    %451 = arith.select %448, %447, %437 : vector<16x128xi1>, vector<16x128xf32>
    %452 = vector.broadcast %450 : i32 to vector<16x128xi32>
    %453 = arith.select %448, %452, %439 : vector<16x128xi1>, vector<16x128xi32>
    %454 = arith.select %449, %447, %440 : vector<16x128xi1>, vector<16x128xf32>
    %455 = vector.broadcast %450 : i32 to vector<16x128xi32>
    %456 = arith.select %449, %455, %442 : vector<16x128xi1>, vector<16x128xi32>
    %c0_44 = arith.constant 0 : index
    %c0_45 = arith.constant 0 : index
    %457 = vector.load %arg9[%c0_44, %c0_45] : memref<16x128xf32, #tpu.memory_space<vmem>>, vector<16x128xf32>
    tpu.vector_store %arg9[%c0_44, %c0_45], %451 {strides = array<i32>} : memref<16x128xf32, #tpu.memory_space<vmem>>, vector<16x128xf32>,
    %c0_46 = arith.constant 0 : index
    %c0_47 = arith.constant 0 : index
    %458 = vector.load %arg10[%c0_46, %c0_47] : memref<16x128xf32, #tpu.memory_space<vmem>>, vector<16x128xf32>
    tpu.vector_store %arg10[%c0_46, %c0_47], %454 {strides = array<i32>} : memref<16x128xf32, #tpu.memory_space<vmem>>, vector<16x128xf32>,
    %c0_48 = arith.constant 0 : index
    %c0_49 = arith.constant 0 : index
    %459 = vector.load %arg11[%c0_48, %c0_49] : memref<16x128xi32, #tpu.memory_space<vmem>>, vector<16x128xi32>
    tpu.vector_store %arg11[%c0_48, %c0_49], %453 {strides = array<i32>} : memref<16x128xi32, #tpu.memory_space<vmem>>, vector<16x128xi32>,
    %c0_50 = arith.constant 0 : index
    %c0_51 = arith.constant 0 : index
    %460 = vector.load %arg12[%c0_50, %c0_51] : memref<16x128xi32, #tpu.memory_space<vmem>>, vector<16x128xi32>
    tpu.vector_store %arg12[%c0_50, %c0_51], %456 {strides = array<i32>} : memref<16x128xi32, #tpu.memory_space<vmem>>, vector<16x128xi32>,
    %c0_i32_52 = arith.constant 0 : i32
    %461 = arith.cmpi eq, %arg2, %c0_i32_52 : i32
    %462 = arith.extui %461 : i1 to i32
    %c0_i32_53 = arith.constant 0 : i32
    %463 = arith.cmpi ne, %462, %c0_i32_53 : i32
    scf.if %463 {
      %c0_54 = arith.constant 0 : index
      %c0_55 = arith.constant 0 : index
      %464 = vector.load %arg9[%c0_54, %c0_55] : memref<16x128xf32, #tpu.memory_space<vmem>>, vector<16x128xf32>
      %c0_56 = arith.constant 0 : index
      %c0_57 = arith.constant 0 : index
      %465 = vector.load %arg10[%c0_56, %c0_57] : memref<16x128xf32, #tpu.memory_space<vmem>>, vector<16x128xf32>
      %466 = arith.addf %464, %465 : vector<16x128xf32>
      %c0_58 = arith.constant 0 : index
      %c0_59 = arith.constant 0 : index
      %467 = vector.load %arg5[%c0_58, %c0_59] : memref<1x128xf32, #tpu.memory_space<vmem>>, vector<1x128xf32>
      %468 = vector.broadcast %467 : vector<1x128xf32> to vector<16x128xf32>
      %469 = arith.addf %466, %468 : vector<16x128xf32>
      %c0_60 = arith.constant 0 : index
      %c0_61 = arith.constant 0 : index
      %470 = vector.load %arg6[%c0_60, %c0_61] : memref<16x128xf32, #tpu.memory_space<vmem>>, vector<16x128xf32>
      tpu.vector_store %arg6[%c0_60, %c0_61], %469 {strides = array<i32>} : memref<16x128xf32, #tpu.memory_space<vmem>>, vector<16x128xf32>,
      %c0_62 = arith.constant 0 : index
      %c0_63 = arith.constant 0 : index
      %471 = vector.load %arg11[%c0_62, %c0_63] : memref<16x128xi32, #tpu.memory_space<vmem>>, vector<16x128xi32>
      %c0_64 = arith.constant 0 : index
      %c0_65 = arith.constant 0 : index
      %472 = vector.load %arg7[%c0_64, %c0_65] : memref<16x128xi32, #tpu.memory_space<vmem>>, vector<16x128xi32>
      tpu.vector_store %arg7[%c0_64, %c0_65], %471 {strides = array<i32>} : memref<16x128xi32, #tpu.memory_space<vmem>>, vector<16x128xi32>,
      %c0_66 = arith.constant 0 : index
      %c0_67 = arith.constant 0 : index
      %473 = vector.load %arg12[%c0_66, %c0_67] : memref<16x128xi32, #tpu.memory_space<vmem>>, vector<16x128xi32>
      %c0_68 = arith.constant 0 : index
      %c0_69 = arith.constant 0 : index
      %474 = vector.load %arg8[%c0_68, %c0_69] : memref<16x128xi32, #tpu.memory_space<vmem>>, vector<16x128xi32>
      tpu.vector_store %arg8[%c0_68, %c0_69], %473 {strides = array<i32>} : memref<16x128xi32, #tpu.memory_space<vmem>>, vector<16x128xi32>,
    } else {
    }
    return
  }
  func.func @transform_0(%arg0: i32, %arg1: i32, %arg2: i32) -> (i32, i32) {
    %c0_i32 = arith.constant 0 : i32
    return %arg1, %arg2 : i32, i32
  }
  func.func @transform_1(%arg0: i32, %arg1: i32, %arg2: i32) -> (i32, i32) {
    %c0_i32 = arith.constant 0 : i32
    return %arg2, %arg0 : i32, i32
  }
  func.func @transform_2(%arg0: i32, %arg1: i32, %arg2: i32) -> (i32, i32) {
    %c0_i32 = arith.constant 0 : i32
    %c0_i32_0 = arith.constant 0 : i32
    return %c0_i32, %arg0 : i32, i32
  }
  func.func @transform_3(%arg0: i32, %arg1: i32, %arg2: i32) -> (i32, i32) {
    %c0_i32 = arith.constant 0 : i32
    return %arg1, %arg0 : i32, i32
  }
  func.func @transform_4(%arg0: i32, %arg1: i32, %arg2: i32) -> (i32, i32) {
    %c0_i32 = arith.constant 0 : i32
    return %arg1, %arg0 : i32, i32
  }
  func.func @transform_5(%arg0: i32, %arg1: i32, %arg2: i32) -> (i32, i32) {
    %c0_i32 = arith.constant 0 : i32
    return %arg1, %arg0 : i32, i32
  }
}

</mosaic_0001>

<llo_original>
// kernel: tpu_custom_call.1
$region0: #{tpu_custom_call.1}
  #allocation0 [shape = 'u32[]', space=smem, size = 0x4, offset = 0x4, fixed_abs, tag = 'smem constant byte address 0x4 - core index']
  #allocation1 [shape = 'u32[144,128]{1,0:T(1,128)}', space=vmem, size = 0x12000, scoped, tag = 'internal scratch']
  #allocation2 [shape = 'f32[16,128]{1,0:T(8,128)}', space=vmem, size = 0x2000, scoped, tag = 'scratch operand']
  #allocation3 [shape = 'f32[16,128]{1,0:T(8,128)}', space=vmem, size = 0x2000, scoped, tag = 'scratch operand']
  #allocation4 [shape = 's32[16,128]{1,0:T(8,128)}', space=vmem, size = 0x2000, scoped, tag = 'scratch operand']
  #allocation5 [shape = 's32[16,128]{1,0:T(8,128)}', space=vmem, size = 0x2000, scoped, tag = 'scratch operand']
  %s0 = inlined_call_operand.hbm [shape: f32[16,32], index: 0, kind: input, shape index: {}]
  %s1 = inlined_call_operand.hbm [shape: f32[32,128], index: 1, kind: input, shape index: {}]
  %s2 = inlined_call_operand.vmem [shape: f32[1,128], index: 2, kind: input, shape index: {}]
  %s3 = inlined_call_operand.hbm [shape: f32[16,128], index: 3, kind: output, shape index: {0}]
  %s4 = inlined_call_operand.hbm [shape: s32[16,128], index: 4, kind: output, shape index: {1}]
  %s5 = inlined_call_operand.hbm [shape: s32[16,128], index: 5, kind: output, shape index: {2}]
  %6 = xla_tuple %s3, %s4, %s5
  %s7 = sld [smem:[#allocation0]]
  $region54: #{tpu_custom_call.1} parent=0
    _
  %s9 = ssub.s32 1, %s7
  %s10 = scalar_select 0, %s9, %s7
  $region1: #{tpu_custom_call.1} parent=0
    #allocation6 [shape = 'u8[8192]{0}', space=vmem, size = 0x2000, scoped, tag = 'input window, operand 0, single buffered']
    #allocation7 [shape = 's32[1]{0}', space=sflag, size = 0x4, scoped, tag = 'scoped memory for tpu_custom_call.1']
    #allocation8 [shape = 's32[1]{0}', space=sflag, size = 0x4, scoped, tag = 'scoped memory for tpu_custom_call.1']
    #allocation9 [shape = 'u8[16384]{0}', space=vmem, size = 0x4000, scoped, tag = 'input window, operand 1, single buffered']
    #allocation10 [shape = 's32[1]{0}', space=sflag, size = 0x4, scoped, tag = 'scoped memory for tpu_custom_call.1']
    #allocation11 [shape = 'u8[8192]{0}', space=vmem, size = 0x2000, scoped, tag = 'output window, operand 0, single buffered']
    #allocation12 [shape = 'u8[8192]{0}', space=vmem, size = 0x2000, scoped, tag = 'output window, operand 1, single buffered']
    #allocation13 [shape = 's32[1]{0}', space=sflag, size = 0x4, scoped, tag = 'scoped memory for tpu_custom_call.1']
    #allocation14 [shape = 'u8[8192]{0}', space=vmem, size = 0x2000, scoped, tag = 'output window, operand 2, single buffered']
    %11 = vsyncpa [#allocation7], 0
    %12 = vsyncpa [#allocation10], 0
    %13 = vsyncpa [#allocation8], 0
    %14 = vsyncpa [#allocation13], 0
    // Predicated region
    $region2: #{tpu_custom_call.1} parent=1 // pred_check
      _
    $region3: #{tpu_custom_call.1} parent=1 // pred_check_branch
      %16 = sbr.rel (0) target = $region5
    $region4: #{tpu_custom_call.1} parent=1 // pred_region
      %s18 = ssub.s32 256, 256
      %19 = vsyncadd [#allocation7], %s18
      %s20 = sshll.u32 [#allocation6], 4
      %s21 = int_to_ptr.vmem [resolvable:$true] %s20
      %26 = dma.hbm_to_vmem [thread:$0]  %s0, 256, %s21, [#allocation7], 128, 128, 8
    $region5: #{tpu_custom_call.1} parent=1 // pred_fallthru
      _
    // Predicated region
    $region6: #{tpu_custom_call.1} parent=1 // pred_check
      _
    $region7: #{tpu_custom_call.1} parent=1 // pred_check_branch
      %28 = sbr.rel (0) target = $region9
    $region8: #{tpu_custom_call.1} parent=1 // pred_region
      %s30 = ssub.s32 512, 512
      %31 = vsyncadd [#allocation10], %s30
      %s32 = sshll.u32 [#allocation9], 4
      %s33 = int_to_ptr.vmem [resolvable:$true] %s32
      %38 = dma.hbm_to_vmem [thread:$0]  %s1, 512, %s33, [#allocation10], 128, 128, 8
    $region9: #{tpu_custom_call.1} parent=1 // pred_fallthru
      _
    // Predicated region
    $region10: #{tpu_custom_call.1} parent=1 // pred_check
      _
    $region11: #{tpu_custom_call.1} parent=1 // pred_check_branch
      %40 = sbr.rel (0) target = $region13
    $region12: #{tpu_custom_call.1} parent=1 // pred_region
      _
    $region13: #{tpu_custom_call.1} parent=1 // pred_fallthru
      _
    // Predicated region
    $region14: #{tpu_custom_call.1} parent=1 // pred_check
      _
    $region15: #{tpu_custom_call.1} parent=1 // pred_check_branch
      %42 = sbr.rel (0) target = $region17
    $region16: #{tpu_custom_call.1} parent=1 // pred_region
      %43 = dma.done [#allocation7], 256
    $region17: #{tpu_custom_call.1} parent=1 // pred_fallthru
      _
    // Predicated region
    $region18: #{tpu_custom_call.1} parent=1 // pred_check
      _
    $region19: #{tpu_custom_call.1} parent=1 // pred_check_branch
      %45 = sbr.rel (0) target = $region21
    $region20: #{tpu_custom_call.1} parent=1 // pred_region
      %46 = dma.done [#allocation10], 512
    $region21: #{tpu_custom_call.1} parent=1 // pred_fallthru
      _
    %p47 = scmp.eq.s32.totalorder 0, 0
    // Predicated region
    $region22: #{tpu_custom_call.1} parent=1 // pred_check
      %p48 = pneg %p47
    $region23: #{tpu_custom_call.1} parent=1 // pred_check_branch
      %50 = sbr.rel (%p48) target = $region25
    $region24: #{tpu_custom_call.1} parent=1 // pred_region
      %51 = vst [vmem:[#allocation2] sm:$0xff] -inf
      %52 = vst [vmem:[#allocation2 + $0x8] sm:$0xff] -inf
      %53 = vst [vmem:[#allocation3] sm:$0xff] inf
      %54 = vst [vmem:[#allocation3 + $0x8] sm:$0xff] inf
      %55 = vst [vmem:[#allocation4] sm:$0xff] 0
      %56 = vst [vmem:[#allocation4 + $0x8] sm:$0xff] 0
      %57 = vst [vmem:[#allocation5] sm:$0xff] 0
      %58 = vst [vmem:[#allocation5 + $0x8] sm:$0xff] 0
    $region25: #{tpu_custom_call.1} parent=1 // pred_fallthru
      _
    %s59 = smul.u32 0, 32
    %v60 = vld [vmem:[#allocation6] sm:$0xff]
    %v61 = vld [vmem:[#allocation6 + $0x8] sm:$0xff]
    %v62 = vld [vmem:[#allocation2] sm:$0xff]
    %v63 = vld [vmem:[#allocation2 + $0x8] sm:$0xff]
    %v64 = vld [vmem:[#allocation3] sm:$0xff]
    %v65 = vld [vmem:[#allocation3 + $0x8] sm:$0xff]
    %v66 = vld [vmem:[#allocation4] sm:$0xff]
    %v67 = vld [vmem:[#allocation4 + $0x8] sm:$0xff]
    %v68 = vld [vmem:[#allocation5] sm:$0xff]
    %v69 = vld [vmem:[#allocation5 + $0x8] sm:$0xff]
    %v70 = vld [vmem:[#allocation9] sm:$0x1]
    %72 = vset.pattern.permute.xlu0 0
    %73 = vperm.xlu0 %72, %v60
    %v74 = vpop.permute.xlu0 %73
    %77 = vset.pattern.permute.xlu0 0
    %78 = vperm.xlu0 %77, %v61
    %v79 = vpop.permute.xlu0 %78
    %v81 = vlaneseq
    %v82 = vshrl.u32 %v81, 7
    %v83 = vsub.s32 0, %v82
    %v84 = vrot.slane %v70, %v83
    %v85 = vmul.f32 %v74, %v84
    %v86 = vmul.f32 %v79, %v84
    %vm87 = vcmp.gt.f32.partialorder %v85, %v62
    %vm88 = vcmp.gt.f32.partialorder %v86, %v63
    %vm89 = vcmp.lt.f32.partialorder %v85, %v64
    %vm90 = vcmp.lt.f32.partialorder %v86, %v65
    %v91 = vsel %vm87, %v85, %v62
    %v92 = vsel %vm88, %v86, %v63
    %v93 = vstv %s59
    %v94 = vsel %vm87, %v93, %v66
    %v95 = vsel %vm88, %v93, %v67
    %v96 = vsel %vm89, %v85, %v64
    %v97 = vsel %vm90, %v86, %v65
    %v98 = vsel %vm89, %v93, %v68
    %v99 = vsel %vm90, %v93, %v69
    %v100 = vld [vmem:[#allocation9 + $0x1] sm:$0x1]
    %101 = vset.pattern.permute.xlu0 1
    %102 = vperm.xlu0 %101, %v60
    %v103 = vpop.permute.xlu0 %102
    %105 = vset.pattern.permute.xlu0 1
    %106 = vperm.xlu0 %105, %v61
    %v107 = vpop.permute.xlu0 %106
    %v109 = vlaneseq
    %v110 = vshrl.u32 %v109, 7
    %v111 = vsub.s32 0, %v110
    %v112 = vrot.slane %v100, %v111
    %v113 = vmul.f32 %v103, %v112
    %v114 = vmul.f32 %v107, %v112
    %vm115 = vcmp.gt.f32.partialorder %v113, %v91
    %vm116 = vcmp.gt.f32.partialorder %v114, %v92
    %vm117 = vcmp.lt.f32.partialorder %v113, %v96
    %vm118 = vcmp.lt.f32.partialorder %v114, %v97
    %s119 = sadd.s32 %s59, 1
    %v120 = vsel %vm115, %v113, %v91
    %v121 = vsel %vm116, %v114, %v92
    %v122 = vstv %s119
    %v123 = vsel %vm115, %v122, %v94
    %v124 = vsel %vm116, %v122, %v95
    %v125 = vsel %vm117, %v113, %v96
    %v126 = vsel %vm118, %v114, %v97
    %v127 = vsel %vm117, %v122, %v98
    %v128 = vsel %vm118, %v122, %v99
    %v129 = vld [vmem:[#allocation9 + $0x2] sm:$0x1]
    %130 = vset.pattern.permute.xlu0 2
    %131 = vperm.xlu0 %130, %v60
    %v132 = vpop.permute.xlu0 %131
    %134 = vset.pattern.permute.xlu0 2
    %135 = vperm.xlu0 %134, %v61
    %v136 = vpop.permute.xlu0 %135
    %v138 = vlaneseq
    %v139 = vshrl.u32 %v138, 7
    %v140 = vsub.s32 0, %v139
    %v141 = vrot.slane %v129, %v140
    %v142 = vmul.f32 %v132, %v141
    %v143 = vmul.f32 %v136, %v141
    %vm144 = vcmp.gt.f32.partialorder %v142, %v120
    %vm145 = vcmp.gt.f32.partialorder %v143, %v121
    %vm146 = vcmp.lt.f32.partialorder %v142, %v125
    %vm147 = vcmp.lt.f32.partialorder %v143, %v126
    %s148 = sadd.s32 %s59, 2
    %v149 = vsel %vm144, %v142, %v120
    %v150 = vsel %vm145, %v143, %v121
    %v151 = vstv %s148
    %v152 = vsel %vm144, %v151, %v123
    %v153 = vsel %vm145, %v151, %v124
    %v154 = vsel %vm146, %v142, %v125
    %v155 = vsel %vm147, %v143, %v126
    %v156 = vsel %vm146, %v151, %v127
    %v157 = vsel %vm147, %v151, %v128
    %v158 = vld [vmem:[#allocation9 + $0x3] sm:$0x1]
    %159 = vset.pattern.permute.xlu0 3
    %160 = vperm.xlu0 %159, %v60
    %v161 = vpop.permute.xlu0 %160
    %163 = vset.pattern.permute.xlu0 3
    %164 = vperm.xlu0 %163, %v61
    %v165 = vpop.permute.xlu0 %164
    %v167 = vlaneseq
    %v168 = vshrl.u32 %v167, 7
    %v169 = vsub.s32 0, %v168
    %v170 = vrot.slane %v158, %v169
    %v171 = vmul.f32 %v161, %v170
    %v172 = vmul.f32 %v165, %v170
    %vm173 = vcmp.gt.f32.partialorder %v171, %v149
    %vm174 = vcmp.gt.f32.partialorder %v172, %v150
    %vm175 = vcmp.lt.f32.partialorder %v171, %v154
    %vm176 = vcmp.lt.f32.partialorder %v172, %v155
    %s177 = sadd.s32 %s59, 3
    %v178 = vsel %vm173, %v171, %v149
    %v179 = vsel %vm174, %v172, %v150
    %v180 = vstv %s177
    %v181 = vsel %vm173, %v180, %v152
    %v182 = vsel %vm174, %v180, %v153
    %v183 = vsel %vm175, %v171, %v154
    %v184 = vsel %vm176, %v172, %v155
    %v185 = vsel %vm175, %v180, %v156
    %v186 = vsel %vm176, %v180, %v157
    %v187 = vld [vmem:[#allocation9 + $0x4] sm:$0x1]
    %188 = vset.pattern.permute.xlu0 4
    %189 = vperm.xlu0 %188, %v60
    %v190 = vpop.permute.xlu0 %189
    %192 = vset.pattern.permute.xlu0 4
    %193 = vperm.xlu0 %192, %v61
    %v194 = vpop.permute.xlu0 %193
    %v196 = vlaneseq
    %v197 = vshrl.u32 %v196, 7
    %v198 = vsub.s32 0, %v197
    %v199 = vrot.slane %v187, %v198
    %v200 = vmul.f32 %v190, %v199
    %v201 = vmul.f32 %v194, %v199
    %vm202 = vcmp.gt.f32.partialorder %v200, %v178
    %vm203 = vcmp.gt.f32.partialorder %v201, %v179
    %vm204 = vcmp.lt.f32.partialorder %v200, %v183
    %vm205 = vcmp.lt.f32.partialorder %v201, %v184
    %s206 = sadd.s32 %s59, 4
    %v207 = vsel %vm202, %v200, %v178
    %v208 = vsel %vm203, %v201, %v179
    %v209 = vstv %s206
    %v210 = vsel %vm202, %v209, %v181
    %v211 = vsel %vm203, %v209, %v182
    %v212 = vsel %vm204, %v200, %v183
    %v213 = vsel %vm205, %v201, %v184
    %v214 = vsel %vm204, %v209, %v185
    %v215 = vsel %vm205, %v209, %v186
    %v216 = vld [vmem:[#allocation9 + $0x5] sm:$0x1]
    %217 = vset.pattern.permute.xlu0 5
    %218 = vperm.xlu0 %217, %v60
    %v219 = vpop.permute.xlu0 %218
    %221 = vset.pattern.permute.xlu0 5
    %222 = vperm.xlu0 %221, %v61
    %v223 = vpop.permute.xlu0 %222
    %v225 = vlaneseq
    %v226 = vshrl.u32 %v225, 7
    %v227 = vsub.s32 0, %v226
    %v228 = vrot.slane %v216, %v227
    %v229 = vmul.f32 %v219, %v228
    %v230 = vmul.f32 %v223, %v228
    %vm231 = vcmp.gt.f32.partialorder %v229, %v207
    %vm232 = vcmp.gt.f32.partialorder %v230, %v208
    %vm233 = vcmp.lt.f32.partialorder %v229, %v212
    %vm234 = vcmp.lt.f32.partialorder %v230, %v213
    %s235 = sadd.s32 %s59, 5
    %v236 = vsel %vm231, %v229, %v207
    %v237 = vsel %vm232, %v230, %v208
    %v238 = vstv %s235
    %v239 = vsel %vm231, %v238, %v210
    %v240 = vsel %vm232, %v238, %v211
    %v241 = vsel %vm233, %v229, %v212
    %v242 = vsel %vm234, %v230, %v213
    %v243 = vsel %vm233, %v238, %v214
    %v244 = vsel %vm234, %v238, %v215
    %v245 = vld [vmem:[#allocation9 + $0x6] sm:$0x1]
    %246 = vset.pattern.permute.xlu0 6
    %247 = vperm.xlu0 %246, %v60
    %v248 = vpop.permute.xlu0 %247
    %250 = vset.pattern.permute.xlu0 6
    %251 = vperm.xlu0 %250, %v61
    %v252 = vpop.permute.xlu0 %251
    %v254 = vlaneseq
    %v255 = vshrl.u32 %v254, 7
    %v256 = vsub.s32 0, %v255
    %v257 = vrot.slane %v245, %v256
    %v258 = vmul.f32 %v248, %v257
    %v259 = vmul.f32 %v252, %v257
    %vm260 = vcmp.gt.f32.partialorder %v258, %v236
    %vm261 = vcmp.gt.f32.partialorder %v259, %v237
    %vm262 = vcmp.lt.f32.partialorder %v258, %v241
    %vm263 = vcmp.lt.f32.partialorder %v259, %v242
    %s264 = sadd.s32 %s59, 6
    %v265 = vsel %vm260, %v258, %v236
    %v266 = vsel %vm261, %v259, %v237
    %v267 = vstv %s264
    %v268 = vsel %vm260, %v267, %v239
    %v269 = vsel %vm261, %v267, %v240
    %v270 = vsel %vm262, %v258, %v241
    %v271 = vsel %vm263, %v259, %v242
    %v272 = vsel %vm262, %v267, %v243
    %v273 = vsel %vm263, %v267, %v244
    %v274 = vld [vmem:[#allocation9 + $0x7] sm:$0x1]
    %275 = vset.pattern.permute.xlu0 7
    %276 = vperm.xlu0 %275, %v60
    %v277 = vpop.permute.xlu0 %276
    %279 = vset.pattern.permute.xlu0 7
    %280 = vperm.xlu0 %279, %v61
    %v281 = vpop.permute.xlu0 %280
    %v283 = vlaneseq
    %v284 = vshrl.u32 %v283, 7
    %v285 = vsub.s32 0, %v284
    %v286 = vrot.slane %v274, %v285
    %v287 = vmul.f32 %v277, %v286
    %v288 = vmul.f32 %v281, %v286
    %vm289 = vcmp.gt.f32.partialorder %v287, %v265
    %vm290 = vcmp.gt.f32.partialorder %v288, %v266
    %vm291 = vcmp.lt.f32.partialorder %v287, %v270
    %vm292 = vcmp.lt.f32.partialorder %v288, %v271
    %s293 = sadd.s32 %s59, 7
    %v294 = vsel %vm289, %v287, %v265
    %v295 = vsel %vm290, %v288, %v266
    %v296 = vstv %s293
    %v297 = vsel %vm289, %v296, %v268
    %v298 = vsel %vm290, %v296, %v269
    %v299 = vsel %vm291, %v287, %v270
    %v300 = vsel %vm292, %v288, %v271
    %v301 = vsel %vm291, %v296, %v272
    %v302 = vsel %vm292, %v296, %v273
    %v303 = vld [vmem:[#allocation9 + $0x8] sm:$0x1]
    %304 = vset.pattern.permute.xlu0 8
    %305 = vperm.xlu0 %304, %v60
    %v306 = vpop.permute.xlu0 %305
    %308 = vset.pattern.permute.xlu0 8
    %309 = vperm.xlu0 %308, %v61
    %v310 = vpop.permute.xlu0 %309
    %v312 = vlaneseq
    %v313 = vshrl.u32 %v312, 7
    %v314 = vsub.s32 0, %v313
    %v315 = vrot.slane %v303, %v314
    %v316 = vmul.f32 %v306, %v315
    %v317 = vmul.f32 %v310, %v315
    %vm318 = vcmp.gt.f32.partialorder %v316, %v294
    %vm319 = vcmp.gt.f32.partialorder %v317, %v295
    %vm320 = vcmp.lt.f32.partialorder %v316, %v299
    %vm321 = vcmp.lt.f32.partialorder %v317, %v300
    %s322 = sadd.s32 %s59, 8
    %v323 = vsel %vm318, %v316, %v294
    %v324 = vsel %vm319, %v317, %v295
    %v325 = vstv %s322
    %v326 = vsel %vm318, %v325, %v297
    %v327 = vsel %vm319, %v325, %v298
    %v328 = vsel %vm320, %v316, %v299
    %v329 = vsel %vm321, %v317, %v300
    %v330 = vsel %vm320, %v325, %v301
    %v331 = vsel %vm321, %v325, %v302
    %v332 = vld [vmem:[#allocation9 + $0x9] sm:$0x1]
    %333 = vset.pattern.permute.xlu0 9
    %334 = vperm.xlu0 %333, %v60
    %v335 = vpop.permute.xlu0 %334
    %337 = vset.pattern.permute.xlu0 9
    %338 = vperm.xlu0 %337, %v61
    %v339 = vpop.permute.xlu0 %338
    %v341 = vlaneseq
    %v342 = vshrl.u32 %v341, 7
    %v343 = vsub.s32 0, %v342
    %v344 = vrot.slane %v332, %v343
    %v345 = vmul.f32 %v335, %v344
    %v346 = vmul.f32 %v339, %v344
    %vm347 = vcmp.gt.f32.partialorder %v345, %v323
    %vm348 = vcmp.gt.f32.partialorder %v346, %v324
    %vm349 = vcmp.lt.f32.partialorder %v345, %v328
    %vm350 = vcmp.lt.f32.partialorder %v346, %v329
    %s351 = sadd.s32 %s59, 9
    %v352 = vsel %vm347, %v345, %v323
    %v353 = vsel %vm348, %v346, %v324
    %v354 = vstv %s351
    %v355 = vsel %vm347, %v354, %v326
    %v356 = vsel %vm348, %v354, %v327
    %v357 = vsel %vm349, %v345, %v328
    %v358 = vsel %vm350, %v346, %v329
    %v359 = vsel %vm349, %v354, %v330
    %v360 = vsel %vm350, %v354, %v331
    %v361 = vld [vmem:[#allocation9 + $0xa] sm:$0x1]
    %362 = vset.pattern.permute.xlu0 10
    %363 = vperm.xlu0 %362, %v60
    %v364 = vpop.permute.xlu0 %363
    %366 = vset.pattern.permute.xlu0 10
    %367 = vperm.xlu0 %366, %v61
    %v368 = vpop.permute.xlu0 %367
    %v370 = vlaneseq
    %v371 = vshrl.u32 %v370, 7
    %v372 = vsub.s32 0, %v371
    %v373 = vrot.slane %v361, %v372
    %v374 = vmul.f32 %v364, %v373
    %v375 = vmul.f32 %v368, %v373
    %vm376 = vcmp.gt.f32.partialorder %v374, %v352
    %vm377 = vcmp.gt.f32.partialorder %v375, %v353
    %vm378 = vcmp.lt.f32.partialorder %v374, %v357
    %vm379 = vcmp.lt.f32.partialorder %v375, %v358
    %s380 = sadd.s32 %s59, 10
    %v381 = vsel %vm376, %v374, %v352
    %v382 = vsel %vm377, %v375, %v353
    %v383 = vstv %s380
    %v384 = vsel %vm376, %v383, %v355
    %v385 = vsel %vm377, %v383, %v356
    %v386 = vsel %vm378, %v374, %v357
    %v387 = vsel %vm379, %v375, %v358
    %v388 = vsel %vm378, %v383, %v359
    %v389 = vsel %vm379, %v383, %v360
    %v390 = vld [vmem:[#allocation9 + $0xb] sm:$0x1]
    %391 = vset.pattern.permute.xlu0 11
    %392 = vperm.xlu0 %391, %v60
    %v393 = vpop.permute.xlu0 %392
    %395 = vset.pattern.permute.xlu0 11
    %396 = vperm.xlu0 %395, %v61
    %v397 = vpop.permute.xlu0 %396
    %v399 = vlaneseq
    %v400 = vshrl.u32 %v399, 7
    %v401 = vsub.s32 0, %v400
    %v402 = vrot.slane %v390, %v401
    %v403 = vmul.f32 %v393, %v402
    %v404 = vmul.f32 %v397, %v402
    %vm405 = vcmp.gt.f32.partialorder %v403, %v381
    %vm406 = vcmp.gt.f32.partialorder %v404, %v382
    %vm407 = vcmp.lt.f32.partialorder %v403, %v386
    %vm408 = vcmp.lt.f32.partialorder %v404, %v387
    %s409 = sadd.s32 %s59, 11
    %v410 = vsel %vm405, %v403, %v381
    %v411 = vsel %vm406, %v404, %v382
    %v412 = vstv %s409
    %v413 = vsel %vm405, %v412, %v384
    %v414 = vsel %vm406, %v412, %v385
    %v415 = vsel %vm407, %v403, %v386
    %v416 = vsel %vm408, %v404, %v387
    %v417 = vsel %vm407, %v412, %v388
    %v418 = vsel %vm408, %v412, %v389
    %v419 = vld [vmem:[#allocation9 + $0xc] sm:$0x1]
    %420 = vset.pattern.permute.xlu0 12
    %421 = vperm.xlu0 %420, %v60
    %v422 = vpop.permute.xlu0 %421
    %424 = vset.pattern.permute.xlu0 12
    %425 = vperm.xlu0 %424, %v61
    %v426 = vpop.permute.xlu0 %425
    %v428 = vlaneseq
    %v429 = vshrl.u32 %v428, 7
    %v430 = vsub.s32 0, %v429
    %v431 = vrot.slane %v419, %v430
    %v432 = vmul.f32 %v422, %v431
    %v433 = vmul.f32 %v426, %v431
    %vm434 = vcmp.gt.f32.partialorder %v432, %v410
    %vm435 = vcmp.gt.f32.partialorder %v433, %v411
    %vm436 = vcmp.lt.f32.partialorder %v432, %v415
    %vm437 = vcmp.lt.f32.partialorder %v433, %v416
    %s438 = sadd.s32 %s59, 12
    %v439 = vsel %vm434, %v432, %v410
    %v440 = vsel %vm435, %v433, %v411
    %v441 = vstv %s438
    %v442 = vsel %vm434, %v441, %v413
    %v443 = vsel %vm435, %v441, %v414
    %v444 = vsel %vm436, %v432, %v415
    %v445 = vsel %vm437, %v433, %v416
    %v446 = vsel %vm436, %v441, %v417
    %v447 = vsel %vm437, %v441, %v418
    %v448 = vld [vmem:[#allocation9 + $0xd] sm:$0x1]
    %449 = vset.pattern.permute.xlu0 13
    %450 = vperm.xlu0 %449, %v60
    %v451 = vpop.permute.xlu0 %450
    %453 = vset.pattern.permute.xlu0 13
    %454 = vperm.xlu0 %453, %v61
    %v455 = vpop.permute.xlu0 %454
    %v457 = vlaneseq
    %v458 = vshrl.u32 %v457, 7
    %v459 = vsub.s32 0, %v458
    %v460 = vrot.slane %v448, %v459
    %v461 = vmul.f32 %v451, %v460
    %v462 = vmul.f32 %v455, %v460
    %vm463 = vcmp.gt.f32.partialorder %v461, %v439
    %vm464 = vcmp.gt.f32.partialorder %v462, %v440
    %vm465 = vcmp.lt.f32.partialorder %v461, %v444
    %vm466 = vcmp.lt.f32.partialorder %v462, %v445
    %s467 = sadd.s32 %s59, 13
    %v468 = vsel %vm463, %v461, %v439
    %v469 = vsel %vm464, %v462, %v440
    %v470 = vstv %s467
    %v471 = vsel %vm463, %v470, %v442
    %v472 = vsel %vm464, %v470, %v443
    %v473 = vsel %vm465, %v461, %v444
    %v474 = vsel %vm466, %v462, %v445
    %v475 = vsel %vm465, %v470, %v446
    %v476 = vsel %vm466, %v470, %v447
    %v477 = vld [vmem:[#allocation9 + $0xe] sm:$0x1]
    %478 = vset.pattern.permute.xlu0 14
    %479 = vperm.xlu0 %478, %v60
    %v480 = vpop.permute.xlu0 %479
    %482 = vset.pattern.permute.xlu0 14
    %483 = vperm.xlu0 %482, %v61
    %v484 = vpop.permute.xlu0 %483
    %v486 = vlaneseq
    %v487 = vshrl.u32 %v486, 7
    %v488 = vsub.s32 0, %v487
    %v489 = vrot.slane %v477, %v488
    %v490 = vmul.f32 %v480, %v489
    %v491 = vmul.f32 %v484, %v489
    %vm492 = vcmp.gt.f32.partialorder %v490, %v468
    %vm493 = vcmp.gt.f32.partialorder %v491, %v469
    %vm494 = vcmp.lt.f32.partialorder %v490, %v473
    %vm495 = vcmp.lt.f32.partialorder %v491, %v474
    %s496 = sadd.s32 %s59, 14
    %v497 = vsel %vm492, %v490, %v468
    %v498 = vsel %vm493, %v491, %v469
    %v499 = vstv %s496
    %v500 = vsel %vm492, %v499, %v471
    %v501 = vsel %vm493, %v499, %v472
    %v502 = vsel %vm494, %v490, %v473
    %v503 = vsel %vm495, %v491, %v474
    %v504 = vsel %vm494, %v499, %v475
    %v505 = vsel %vm495, %v499, %v476
    %v506 = vld [vmem:[#allocation9 + $0xf] sm:$0x1]
    %507 = vset.pattern.permute.xlu0 15
    %508 = vperm.xlu0 %507, %v60
    %v509 = vpop.permute.xlu0 %508
    %511 = vset.pattern.permute.xlu0 15
    %512 = vperm.xlu0 %511, %v61
    %v513 = vpop.permute.xlu0 %512
    %v515 = vlaneseq
    %v516 = vshrl.u32 %v515, 7
    %v517 = vsub.s32 0, %v516
    %v518 = vrot.slane %v506, %v517
    %v519 = vmul.f32 %v509, %v518
    %v520 = vmul.f32 %v513, %v518
    %vm521 = vcmp.gt.f32.partialorder %v519, %v497
    %vm522 = vcmp.gt.f32.partialorder %v520, %v498
    %vm523 = vcmp.lt.f32.partialorder %v519, %v502
    %vm524 = vcmp.lt.f32.partialorder %v520, %v503
    %s525 = sadd.s32 %s59, 15
    %v526 = vsel %vm521, %v519, %v497
    %v527 = vsel %vm522, %v520, %v498
    %v528 = vstv %s525
    %v529 = vsel %vm521, %v528, %v500
    %v530 = vsel %vm522, %v528, %v501
    %v531 = vsel %vm523, %v519, %v502
    %v532 = vsel %vm524, %v520, %v503
    %v533 = vsel %vm523, %v528, %v504
    %v534 = vsel %vm524, %v528, %v505
    %v535 = vld [vmem:[#allocation9 + $0x10] sm:$0x1]
    %536 = vset.pattern.permute.xlu0 16
    %537 = vperm.xlu0 %536, %v60
    %v538 = vpop.permute.xlu0 %537
    %540 = vset.pattern.permute.xlu0 16
    %541 = vperm.xlu0 %540, %v61
    %v542 = vpop.permute.xlu0 %541
    %v544 = vlaneseq
    %v545 = vshrl.u32 %v544, 7
    %v546 = vsub.s32 0, %v545
    %v547 = vrot.slane %v535, %v546
    %v548 = vmul.f32 %v538, %v547
    %v549 = vmul.f32 %v542, %v547
    %vm550 = vcmp.gt.f32.partialorder %v548, %v526
    %vm551 = vcmp.gt.f32.partialorder %v549, %v527
    %vm552 = vcmp.lt.f32.partialorder %v548, %v531
    %vm553 = vcmp.lt.f32.partialorder %v549, %v532
    %s554 = sadd.s32 %s59, 16
    %v555 = vsel %vm550, %v548, %v526
    %v556 = vsel %vm551, %v549, %v527
    %v557 = vstv %s554
    %v558 = vsel %vm550, %v557, %v529
    %v559 = vsel %vm551, %v557, %v530
    %v560 = vsel %vm552, %v548, %v531
    %v561 = vsel %vm553, %v549, %v532
    %v562 = vsel %vm552, %v557, %v533
    %v563 = vsel %vm553, %v557, %v534
    %v564 = vld [vmem:[#allocation9 + $0x11] sm:$0x1]
    %565 = vset.pattern.permute.xlu0 17
    %566 = vperm.xlu0 %565, %v60
    %v567 = vpop.permute.xlu0 %566
    %569 = vset.pattern.permute.xlu0 17
    %570 = vperm.xlu0 %569, %v61
    %v571 = vpop.permute.xlu0 %570
    %v573 = vlaneseq
    %v574 = vshrl.u32 %v573, 7
    %v575 = vsub.s32 0, %v574
    %v576 = vrot.slane %v564, %v575
    %v577 = vmul.f32 %v567, %v576
    %v578 = vmul.f32 %v571, %v576
    %vm579 = vcmp.gt.f32.partialorder %v577, %v555
    %vm580 = vcmp.gt.f32.partialorder %v578, %v556
    %vm581 = vcmp.lt.f32.partialorder %v577, %v560
    %vm582 = vcmp.lt.f32.partialorder %v578, %v561
    %s583 = sadd.s32 %s59, 17
    %v584 = vsel %vm579, %v577, %v555
    %v585 = vsel %vm580, %v578, %v556
    %v586 = vstv %s583
    %v587 = vsel %vm579, %v586, %v558
    %v588 = vsel %vm580, %v586, %v559
    %v589 = vsel %vm581, %v577, %v560
    %v590 = vsel %vm582, %v578, %v561
    %v591 = vsel %vm581, %v586, %v562
    %v592 = vsel %vm582, %v586, %v563
    %v593 = vld [vmem:[#allocation9 + $0x12] sm:$0x1]
    %594 = vset.pattern.permute.xlu0 18
    %595 = vperm.xlu0 %594, %v60
    %v596 = vpop.permute.xlu0 %595
    %598 = vset.pattern.permute.xlu0 18
    %599 = vperm.xlu0 %598, %v61
    %v600 = vpop.permute.xlu0 %599
    %v602 = vlaneseq
    %v603 = vshrl.u32 %v602, 7
    %v604 = vsub.s32 0, %v603
    %v605 = vrot.slane %v593, %v604
    %v606 = vmul.f32 %v596, %v605
    %v607 = vmul.f32 %v600, %v605
    %vm608 = vcmp.gt.f32.partialorder %v606, %v584
    %vm609 = vcmp.gt.f32.partialorder %v607, %v585
    %vm610 = vcmp.lt.f32.partialorder %v606, %v589
    %vm611 = vcmp.lt.f32.partialorder %v607, %v590
    %s612 = sadd.s32 %s59, 18
    %v613 = vsel %vm608, %v606, %v584
    %v614 = vsel %vm609, %v607, %v585
    %v615 = vstv %s612
    %v616 = vsel %vm608, %v615, %v587
    %v617 = vsel %vm609, %v615, %v588
    %v618 = vsel %vm610, %v606, %v589
    %v619 = vsel %vm611, %v607, %v590
    %v620 = vsel %vm610, %v615, %v591
    %v621 = vsel %vm611, %v615, %v592
    %v622 = vld [vmem:[#allocation9 + $0x13] sm:$0x1]
    %623 = vset.pattern.permute.xlu0 19
    %624 = vperm.xlu0 %623, %v60
    %v625 = vpop.permute.xlu0 %624
    %627 = vset.pattern.permute.xlu0 19
    %628 = vperm.xlu0 %627, %v61
    %v629 = vpop.permute.xlu0 %628
    %v631 = vlaneseq
    %v632 = vshrl.u32 %v631, 7
    %v633 = vsub.s32 0, %v632
    %v634 = vrot.slane %v622, %v633
    %v635 = vmul.f32 %v625, %v634
    %v636 = vmul.f32 %v629, %v634
    %vm637 = vcmp.gt.f32.partialorder %v635, %v613
    %vm638 = vcmp.gt.f32.partialorder %v636, %v614
    %vm639 = vcmp.lt.f32.partialorder %v635, %v618
    %vm640 = vcmp.lt.f32.partialorder %v636, %v619
    %s641 = sadd.s32 %s59, 19
    %v642 = vsel %vm637, %v635, %v613
    %v643 = vsel %vm638, %v636, %v614
    %v644 = vstv %s641
    %v645 = vsel %vm637, %v644, %v616
    %v646 = vsel %vm638, %v644, %v617
    %v647 = vsel %vm639, %v635, %v618
    %v648 = vsel %vm640, %v636, %v619
    %v649 = vsel %vm639, %v644, %v620
    %v650 = vsel %vm640, %v644, %v621
    %v651 = vld [vmem:[#allocation9 + $0x14] sm:$0x1]
    %652 = vset.pattern.permute.xlu0 20
    %653 = vperm.xlu0 %652, %v60
    %v654 = vpop.permute.xlu0 %653
    %656 = vset.pattern.permute.xlu0 20
    %657 = vperm.xlu0 %656, %v61
    %v658 = vpop.permute.xlu0 %657
    %v660 = vlaneseq
    %v661 = vshrl.u32 %v660, 7
    %v662 = vsub.s32 0, %v661
    %v663 = vrot.slane %v651, %v662
    %v664 = vmul.f32 %v654, %v663
    %v665 = vmul.f32 %v658, %v663
    %vm666 = vcmp.gt.f32.partialorder %v664, %v642
    %vm667 = vcmp.gt.f32.partialorder %v665, %v643
    %vm668 = vcmp.lt.f32.partialorder %v664, %v647
    %vm669 = vcmp.lt.f32.partialorder %v665, %v648
    %s670 = sadd.s32 %s59, 20
    %v671 = vsel %vm666, %v664, %v642
    %v672 = vsel %vm667, %v665, %v643
    %v673 = vstv %s670
    %v674 = vsel %vm666, %v673, %v645
    %v675 = vsel %vm667, %v673, %v646
    %v676 = vsel %vm668, %v664, %v647
    %v677 = vsel %vm669, %v665, %v648
    %v678 = vsel %vm668, %v673, %v649
    %v679 = vsel %vm669, %v673, %v650
    %v680 = vld [vmem:[#allocation9 + $0x15] sm:$0x1]
    %681 = vset.pattern.permute.xlu0 21
    %682 = vperm.xlu0 %681, %v60
    %v683 = vpop.permute.xlu0 %682
    %685 = vset.pattern.permute.xlu0 21
    %686 = vperm.xlu0 %685, %v61
    %v687 = vpop.permute.xlu0 %686
    %v689 = vlaneseq
    %v690 = vshrl.u32 %v689, 7
    %v691 = vsub.s32 0, %v690
    %v692 = vrot.slane %v680, %v691
    %v693 = vmul.f32 %v683, %v692
    %v694 = vmul.f32 %v687, %v692
    %vm695 = vcmp.gt.f32.partialorder %v693, %v671
    %vm696 = vcmp.gt.f32.partialorder %v694, %v672
    %vm697 = vcmp.lt.f32.partialorder %v693, %v676
    %vm698 = vcmp.lt.f32.partialorder %v694, %v677
    %s699 = sadd.s32 %s59, 21
    %v700 = vsel %vm695, %v693, %v671
    %v701 = vsel %vm696, %v694, %v672
    %v702 = vstv %s699
    %v703 = vsel %vm695, %v702, %v674
    %v704 = vsel %vm696, %v702, %v675
    %v705 = vsel %vm697, %v693, %v676
    %v706 = vsel %vm698, %v694, %v677
    %v707 = vsel %vm697, %v702, %v678
    %v708 = vsel %vm698, %v702, %v679
    %v709 = vld [vmem:[#allocation9 + $0x16] sm:$0x1]
    %710 = vset.pattern.permute.xlu0 22
    %711 = vperm.xlu0 %710, %v60
    %v712 = vpop.permute.xlu0 %711
    %714 = vset.pattern.permute.xlu0 22
    %715 = vperm.xlu0 %714, %v61
    %v716 = vpop.permute.xlu0 %715
    %v718 = vlaneseq
    %v719 = vshrl.u32 %v718, 7
    %v720 = vsub.s32 0, %v719
    %v721 = vrot.slane %v709, %v720
    %v722 = vmul.f32 %v712, %v721
    %v723 = vmul.f32 %v716, %v721
    %vm724 = vcmp.gt.f32.partialorder %v722, %v700
    %vm725 = vcmp.gt.f32.partialorder %v723, %v701
    %vm726 = vcmp.lt.f32.partialorder %v722, %v705
    %vm727 = vcmp.lt.f32.partialorder %v723, %v706
    %s728 = sadd.s32 %s59, 22
    %v729 = vsel %vm724, %v722, %v700
    %v730 = vsel %vm725, %v723, %v701
    %v731 = vstv %s728
    %v732 = vsel %vm724, %v731, %v703
    %v733 = vsel %vm725, %v731, %v704
    %v734 = vsel %vm726, %v722, %v705
    %v735 = vsel %vm727, %v723, %v706
    %v736 = vsel %vm726, %v731, %v707
    %v737 = vsel %vm727, %v731, %v708
    %v738 = vld [vmem:[#allocation9 + $0x17] sm:$0x1]
    %739 = vset.pattern.permute.xlu0 23
    %740 = vperm.xlu0 %739, %v60
    %v741 = vpop.permute.xlu0 %740
    %743 = vset.pattern.permute.xlu0 23
    %744 = vperm.xlu0 %743, %v61
    %v745 = vpop.permute.xlu0 %744
    %v747 = vlaneseq
    %v748 = vshrl.u32 %v747, 7
    %v749 = vsub.s32 0, %v748
    %v750 = vrot.slane %v738, %v749
    %v751 = vmul.f32 %v741, %v750
    %v752 = vmul.f32 %v745, %v750
    %vm753 = vcmp.gt.f32.partialorder %v751, %v729
    %vm754 = vcmp.gt.f32.partialorder %v752, %v730
    %vm755 = vcmp.lt.f32.partialorder %v751, %v734
    %vm756 = vcmp.lt.f32.partialorder %v752, %v735
    %s757 = sadd.s32 %s59, 23
    %v758 = vsel %vm753, %v751, %v729
    %v759 = vsel %vm754, %v752, %v730
    %v760 = vstv %s757
    %v761 = vsel %vm753, %v760, %v732
    %v762 = vsel %vm754, %v760, %v733
    %v763 = vsel %vm755, %v751, %v734
    %v764 = vsel %vm756, %v752, %v735
    %v765 = vsel %vm755, %v760, %v736
    %v766 = vsel %vm756, %v760, %v737
    %v767 = vld [vmem:[#allocation9 + $0x18] sm:$0x1]
    %768 = vset.pattern.permute.xlu0 24
    %769 = vperm.xlu0 %768, %v60
    %v770 = vpop.permute.xlu0 %769
    %772 = vset.pattern.permute.xlu0 24
    %773 = vperm.xlu0 %772, %v61
    %v774 = vpop.permute.xlu0 %773
    %v776 = vlaneseq
    %v777 = vshrl.u32 %v776, 7
    %v778 = vsub.s32 0, %v777
    %v779 = vrot.slane %v767, %v778
    %v780 = vmul.f32 %v770, %v779
    %v781 = vmul.f32 %v774, %v779
    %vm782 = vcmp.gt.f32.partialorder %v780, %v758
    %vm783 = vcmp.gt.f32.partialorder %v781, %v759
    %vm784 = vcmp.lt.f32.partialorder %v780, %v763
    %vm785 = vcmp.lt.f32.partialorder %v781, %v764
    %s786 = sadd.s32 %s59, 24
    %v787 = vsel %vm782, %v780, %v758
    %v788 = vsel %vm783, %v781, %v759
    %v789 = vstv %s786
    %v790 = vsel %vm782, %v789, %v761
    %v791 = vsel %vm783, %v789, %v762
    %v792 = vsel %vm784, %v780, %v763
    %v793 = vsel %vm785, %v781, %v764
    %v794 = vsel %vm784, %v789, %v765
    %v795 = vsel %vm785, %v789, %v766
    %v796 = vld [vmem:[#allocation9 + $0x19] sm:$0x1]
    %797 = vset.pattern.permute.xlu0 25
    %798 = vperm.xlu0 %797, %v60
    %v799 = vpop.permute.xlu0 %798
    %801 = vset.pattern.permute.xlu0 25
    %802 = vperm.xlu0 %801, %v61
    %v803 = vpop.permute.xlu0 %802
    %v805 = vlaneseq
    %v806 = vshrl.u32 %v805, 7
    %v807 = vsub.s32 0, %v806
    %v808 = vrot.slane %v796, %v807
    %v809 = vmul.f32 %v799, %v808
    %v810 = vmul.f32 %v803, %v808
    %vm811 = vcmp.gt.f32.partialorder %v809, %v787
    %vm812 = vcmp.gt.f32.partialorder %v810, %v788
    %vm813 = vcmp.lt.f32.partialorder %v809, %v792
    %vm814 = vcmp.lt.f32.partialorder %v810, %v793
    %s815 = sadd.s32 %s59, 25
    %v816 = vsel %vm811, %v809, %v787
    %v817 = vsel %vm812, %v810, %v788
    %v818 = vstv %s815
    %v819 = vsel %vm811, %v818, %v790
    %v820 = vsel %vm812, %v818, %v791
    %v821 = vsel %vm813, %v809, %v792
    %v822 = vsel %vm814, %v810, %v793
    %v823 = vsel %vm813, %v818, %v794
    %v824 = vsel %vm814, %v818, %v795
    %v825 = vld [vmem:[#allocation9 + $0x1a] sm:$0x1]
    %826 = vset.pattern.permute.xlu0 26
    %827 = vperm.xlu0 %826, %v60
    %v828 = vpop.permute.xlu0 %827
    %830 = vset.pattern.permute.xlu0 26
    %831 = vperm.xlu0 %830, %v61
    %v832 = vpop.permute.xlu0 %831
    %v834 = vlaneseq
    %v835 = vshrl.u32 %v834, 7
    %v836 = vsub.s32 0, %v835
    %v837 = vrot.slane %v825, %v836
    %v838 = vmul.f32 %v828, %v837
    %v839 = vmul.f32 %v832, %v837
    %vm840 = vcmp.gt.f32.partialorder %v838, %v816
    %vm841 = vcmp.gt.f32.partialorder %v839, %v817
    %vm842 = vcmp.lt.f32.partialorder %v838, %v821
    %vm843 = vcmp.lt.f32.partialorder %v839, %v822
    %s844 = sadd.s32 %s59, 26
    %v845 = vsel %vm840, %v838, %v816
    %v846 = vsel %vm841, %v839, %v817
    %v847 = vstv %s844
    %v848 = vsel %vm840, %v847, %v819
    %v849 = vsel %vm841, %v847, %v820
    %v850 = vsel %vm842, %v838, %v821
    %v851 = vsel %vm843, %v839, %v822
    %v852 = vsel %vm842, %v847, %v823
    %v853 = vsel %vm843, %v847, %v824
    %v854 = vld [vmem:[#allocation9 + $0x1b] sm:$0x1]
    %855 = vset.pattern.permute.xlu0 27
    %856 = vperm.xlu0 %855, %v60
    %v857 = vpop.permute.xlu0 %856
    %859 = vset.pattern.permute.xlu0 27
    %860 = vperm.xlu0 %859, %v61
    %v861 = vpop.permute.xlu0 %860
    %v863 = vlaneseq
    %v864 = vshrl.u32 %v863, 7
    %v865 = vsub.s32 0, %v864
    %v866 = vrot.slane %v854, %v865
    %v867 = vmul.f32 %v857, %v866
    %v868 = vmul.f32 %v861, %v866
    %vm869 = vcmp.gt.f32.partialorder %v867, %v845
    %vm870 = vcmp.gt.f32.partialorder %v868, %v846
    %vm871 = vcmp.lt.f32.partialorder %v867, %v850
    %vm872 = vcmp.lt.f32.partialorder %v868, %v851
    %s873 = sadd.s32 %s59, 27
    %v874 = vsel %vm869, %v867, %v845
    %v875 = vsel %vm870, %v868, %v846
    %v876 = vstv %s873
    %v877 = vsel %vm869, %v876, %v848
    %v878 = vsel %vm870, %v876, %v849
    %v879 = vsel %vm871, %v867, %v850
    %v880 = vsel %vm872, %v868, %v851
    %v881 = vsel %vm871, %v876, %v852
    %v882 = vsel %vm872, %v876, %v853
    %v883 = vld [vmem:[#allocation9 + $0x1c] sm:$0x1]
    %884 = vset.pattern.permute.xlu0 28
    %885 = vperm.xlu0 %884, %v60
    %v886 = vpop.permute.xlu0 %885
    %888 = vset.pattern.permute.xlu0 28
    %889 = vperm.xlu0 %888, %v61
    %v890 = vpop.permute.xlu0 %889
    %v892 = vlaneseq
    %v893 = vshrl.u32 %v892, 7
    %v894 = vsub.s32 0, %v893
    %v895 = vrot.slane %v883, %v894
    %v896 = vmul.f32 %v886, %v895
    %v897 = vmul.f32 %v890, %v895
    %vm898 = vcmp.gt.f32.partialorder %v896, %v874
    %vm899 = vcmp.gt.f32.partialorder %v897, %v875
    %vm900 = vcmp.lt.f32.partialorder %v896, %v879
    %vm901 = vcmp.lt.f32.partialorder %v897, %v880
    %s902 = sadd.s32 %s59, 28
    %v903 = vsel %vm898, %v896, %v874
    %v904 = vsel %vm899, %v897, %v875
    %v905 = vstv %s902
    %v906 = vsel %vm898, %v905, %v877
    %v907 = vsel %vm899, %v905, %v878
    %v908 = vsel %vm900, %v896, %v879
    %v909 = vsel %vm901, %v897, %v880
    %v910 = vsel %vm900, %v905, %v881
    %v911 = vsel %vm901, %v905, %v882
    %v912 = vld [vmem:[#allocation9 + $0x1d] sm:$0x1]
    %913 = vset.pattern.permute.xlu0 29
    %914 = vperm.xlu0 %913, %v60
    %v915 = vpop.permute.xlu0 %914
    %917 = vset.pattern.permute.xlu0 29
    %918 = vperm.xlu0 %917, %v61
    %v919 = vpop.permute.xlu0 %918
    %v921 = vlaneseq
    %v922 = vshrl.u32 %v921, 7
    %v923 = vsub.s32 0, %v922
    %v924 = vrot.slane %v912, %v923
    %v925 = vmul.f32 %v915, %v924
    %v926 = vmul.f32 %v919, %v924
    %vm927 = vcmp.gt.f32.partialorder %v925, %v903
    %vm928 = vcmp.gt.f32.partialorder %v926, %v904
    %vm929 = vcmp.lt.f32.partialorder %v925, %v908
    %vm930 = vcmp.lt.f32.partialorder %v926, %v909
    %s931 = sadd.s32 %s59, 29
    %v932 = vsel %vm927, %v925, %v903
    %v933 = vsel %vm928, %v926, %v904
    %v934 = vstv %s931
    %v935 = vsel %vm927, %v934, %v906
    %v936 = vsel %vm928, %v934, %v907
    %v937 = vsel %vm929, %v925, %v908
    %v938 = vsel %vm930, %v926, %v909
    %v939 = vsel %vm929, %v934, %v910
    %v940 = vsel %vm930, %v934, %v911
    %v941 = vld [vmem:[#allocation9 + $0x1e] sm:$0x1]
    %942 = vset.pattern.permute.xlu0 30
    %943 = vperm.xlu0 %942, %v60
    %v944 = vpop.permute.xlu0 %943
    %946 = vset.pattern.permute.xlu0 30
    %947 = vperm.xlu0 %946, %v61
    %v948 = vpop.permute.xlu0 %947
    %v950 = vlaneseq
    %v951 = vshrl.u32 %v950, 7
    %v952 = vsub.s32 0, %v951
    %v953 = vrot.slane %v941, %v952
    %v954 = vmul.f32 %v944, %v953
    %v955 = vmul.f32 %v948, %v953
    %vm956 = vcmp.gt.f32.partialorder %v954, %v932
    %vm957 = vcmp.gt.f32.partialorder %v955, %v933
    %vm958 = vcmp.lt.f32.partialorder %v954, %v937
    %vm959 = vcmp.lt.f32.partialorder %v955, %v938
    %s960 = sadd.s32 %s59, 30
    %v961 = vsel %vm956, %v954, %v932
    %v962 = vsel %vm957, %v955, %v933
    %v963 = vstv %s960
    %v964 = vsel %vm956, %v963, %v935
    %v965 = vsel %vm957, %v963, %v936
    %v966 = vsel %vm958, %v954, %v937
    %v967 = vsel %vm959, %v955, %v938
    %v968 = vsel %vm958, %v963, %v939
    %v969 = vsel %vm959, %v963, %v940
    %v970 = vld [vmem:[#allocation9 + $0x1f] sm:$0x1]
    %971 = vset.pattern.permute.xlu0 31
    %972 = vperm.xlu0 %971, %v60
    %v973 = vpop.permute.xlu0 %972
    %975 = vset.pattern.permute.xlu0 31
    %976 = vperm.xlu0 %975, %v61
    %v977 = vpop.permute.xlu0 %976
    %v979 = vlaneseq
    %v980 = vshrl.u32 %v979, 7
    %v981 = vsub.s32 0, %v980
    %v982 = vrot.slane %v970, %v981
    %v983 = vmul.f32 %v973, %v982
    %v984 = vmul.f32 %v977, %v982
    %vm985 = vcmp.gt.f32.partialorder %v983, %v961
    %vm986 = vcmp.gt.f32.partialorder %v984, %v962
    %vm987 = vcmp.lt.f32.partialorder %v983, %v966
    %vm988 = vcmp.lt.f32.partialorder %v984, %v967
    %s989 = sadd.s32 %s59, 31
    %v990 = vsel %vm985, %v983, %v961
    %v991 = vsel %vm986, %v984, %v962
    %v992 = vstv %s989
    %v993 = vsel %vm985, %v992, %v964
    %v994 = vsel %vm986, %v992, %v965
    %v995 = vsel %vm987, %v983, %v966
    %v996 = vsel %vm988, %v984, %v967
    %v997 = vsel %vm987, %v992, %v968
    %v998 = vsel %vm988, %v992, %v969
    %999 = vst [vmem:[#allocation2] sm:$0xff] %v990
    %1000 = vst [vmem:[#allocation2 + $0x8] sm:$0xff] %v991
    %1001 = vst [vmem:[#allocation3] sm:$0xff] %v995
    %1002 = vst [vmem:[#allocation3 + $0x8] sm:$0xff] %v996
    %1003 = vst [vmem:[#allocation4] sm:$0xff] %v993
    %1004 = vst [vmem:[#allocation4 + $0x8] sm:$0xff] %v994
    %1005 = vst [vmem:[#allocation5] sm:$0xff] %v997
    %1006 = vst [vmem:[#allocation5 + $0x8] sm:$0xff] %v998
    // Predicated region
    $region26: #{tpu_custom_call.1} parent=1 // pred_check
      %p1007 = pneg %p47
    $region27: #{tpu_custom_call.1} parent=1 // pred_check_branch
      %1009 = sbr.rel (%p1007) target = $region29
    $region28: #{tpu_custom_call.1} parent=1 // pred_region
      %v1010 = vld [vmem:[#allocation2] sm:$0xff]
      %v1011 = vld [vmem:[#allocation2 + $0x8] sm:$0xff]
      %v1012 = vld [vmem:[#allocation3] sm:$0xff]
      %v1013 = vld [vmem:[#allocation3 + $0x8] sm:$0xff]
      %v1014 = vadd.f32 %v1010, %v1012
      %v1015 = vadd.f32 %v1011, %v1013
      %v1016 = vld [vmem:[%s2] sm:$0x1]
      %v1018 = vlaneseq
      %v1019 = vshrl.u32 %v1018, 7
      %v1020 = vsub.s32 0, %v1019
      %v1021 = vrot.slane %v1016, %v1020
      %v1023 = vadd.f32 %v1014, %v1021
      %v1024 = vadd.f32 %v1015, %v1021
      %1025 = vst [vmem:[#allocation11] sm:$0xff] %v1023
      %1026 = vst [vmem:[#allocation11 + $0x8] sm:$0xff] %v1024
      %v1027 = vld [vmem:[#allocation4] sm:$0xff]
      %v1028 = vld [vmem:[#allocation4 + $0x8] sm:$0xff]
      %1029 = vst [vmem:[#allocation12] sm:$0xff] %v1027
      %1030 = vst [vmem:[#allocation12 + $0x8] sm:$0xff] %v1028
      %v1031 = vld [vmem:[#allocation5] sm:$0xff]
      %v1032 = vld [vmem:[#allocation5 + $0x8] sm:$0xff]
      %1033 = vst [vmem:[#allocation14] sm:$0xff] %v1031
      %1034 = vst [vmem:[#allocation14 + $0x8] sm:$0xff] %v1032
    $region29: #{tpu_custom_call.1} parent=1 // pred_fallthru
      _
    // Predicated region
    $region30: #{tpu_custom_call.1} parent=1 // pred_check
      _
    $region31: #{tpu_custom_call.1} parent=1 // pred_check_branch
      %1036 = sbr.rel (0) target = $region33
    $region32: #{tpu_custom_call.1} parent=1 // pred_region
      %s1038 = ssub.s32 256, 256
      %1039 = vsyncadd [#allocation8], %s1038
      %s1040 = sshll.u32 [#allocation11], 4
      %s1041 = int_to_ptr.vmem [resolvable:$true] %s1040
      %1046 = dma.vmem_to_hbm [thread:$0]  %s1041, 256, %s3, [#allocation8], 128, 128, 8
    $region33: #{tpu_custom_call.1} parent=1 // pred_fallthru
      _
    // Predicated region
    $region34: #{tpu_custom_call.1} parent=1 // pred_check
      _
    $region35: #{tpu_custom_call.1} parent=1 // pred_check_branch
      %1048 = sbr.rel (0) target = $region37
    $region36: #{tpu_custom_call.1} parent=1 // pred_region
      %s1050 = ssub.s32 256, 256
      %1051 = vsyncadd [#allocation13], %s1050
      %s1052 = sshll.u32 [#allocation12], 4
      %s1053 = int_to_ptr.vmem [resolvable:$true] %s1052
      %1058 = dma.vmem_to_hbm [thread:$0]  %s1053, 256, %s4, [#allocation13], 128, 128, 8
    $region37: #{tpu_custom_call.1} parent=1 // pred_fallthru
      _
    // Predicated region
    $region38: #{tpu_custom_call.1} parent=1 // pred_check
      _
    $region39: #{tpu_custom_call.1} parent=1 // pred_check_branch
      %1060 = sbr.rel (0) target = $region41
    $region40: #{tpu_custom_call.1} parent=1 // pred_region
      %s1062 = ssub.s32 256, 256
      %1063 = vsyncadd [#allocation13], %s1062
      %s1064 = sshll.u32 [#allocation14], 4
      %s1065 = int_to_ptr.vmem [resolvable:$true] %s1064
      %1070 = dma.vmem_to_hbm [thread:$0]  %s1065, 256, %s5, [#allocation13], 128, 128, 8
    $region41: #{tpu_custom_call.1} parent=1 // pred_fallthru
      _
    // Predicated region
    $region42: #{tpu_custom_call.1} parent=1 // pred_check
      _
    $region43: #{tpu_custom_call.1} parent=1 // pred_check_branch
      %1072 = sbr.rel (0) target = $region45
    $region44: #{tpu_custom_call.1} parent=1 // pred_region
      %1073 = dma.done [#allocation8], 256
    $region45: #{tpu_custom_call.1} parent=1 // pred_fallthru
      _
    // Predicated region
    $region46: #{tpu_custom_call.1} parent=1 // pred_check
      _
    $region47: #{tpu_custom_call.1} parent=1 // pred_check_branch
      %1075 = sbr.rel (0) target = $region49
    $region48: #{tpu_custom_call.1} parent=1 // pred_region
      %1076 = dma.done [#allocation13], 256
    $region49: #{tpu_custom_call.1} parent=1 // pred_fallthru
      _
    // Predicated region
    $region50: #{tpu_custom_call.1} parent=1 // pred_check
      _
    $region51: #{tpu_custom_call.1} parent=1 // pred_check_branch
      %1078 = sbr.rel (0) target = $region53
    $region52: #{tpu_custom_call.1} parent=1 // pred_region
      %1079 = dma.done [#allocation13], 256
    $region53: #{tpu_custom_call.1} parent=1 // pred_fallthru
      _
    %1080 = vsyncpa [#allocation7], 1
    %1081 = vsyncpa [#allocation10], 1
    %1082 = vsyncpa [#allocation8], 1
    %1083 = vsyncpa [#allocation13], 1

</llo_original>
